<compile_context>
chip_gen: v5e
topology: v5e:2x2
jax: 0.10.0
libtpu: 0.0.40
codegen_flags: <defaults>
</compile_context>

<pallas_src>
import jax
import jax.numpy as jnp
from jax.experimental import pallas as pl
from jax.experimental.pallas import tpu as pltpu

IN_F, HID_F, OUT_F = 4, 16, 3
LANE = 128
GROUP = LANE // IN_F          # 32 samples packed per 128-lane row
HID_W = GROUP * HID_F         # 512
OUT_W = GROUP * OUT_F         # 96

_TARGET_ROWS = 4096           # ~131K samples / ~3.5 MB HBM per grid step
_MIN_SPLIT_ROWS = 1024        # never shrink a step below ~32K samples just to add steps


def _iris_mlp_kernel(x_ref, w1_ref, b1_ref, w2_ref, b2_ref, o_ref):
    # Trace-time choice: exact f32 MXU passes in f32-parity mode.
    prec = jax.lax.Precision.HIGHEST if w1_ref.dtype == jnp.float32 else None
    x = x_ref[...].astype(w1_ref.dtype)          # in-kernel cast (VPU has slack)
    # Layer 1: (tile_rows, 128) @ (128, 512) -> f32 accumulation on the MXU.
    h = jnp.dot(x, w1_ref[...], preferred_element_type=jnp.float32,
                precision=prec)
    h = jnp.maximum(h + b1_ref[...], 0.0)        # bias + ReLU in f32 on the VPU
    # Layer 2: (tile_rows, 512) @ (512, 96) -> f32 accumulation on the MXU.
    out = jnp.dot(h.astype(w2_ref.dtype), w2_ref[...],
                  preferred_element_type=jnp.float32, precision=prec)
    o_ref[...] = (out + b2_ref[...]).astype(o_ref.dtype)


def _choose_tile_rows(num_rows):
    """Rows (of 32 samples each) per grid step."""
    if num_rows <= 8:
        return num_rows                           # single full-extent block
    tile = min(_TARGET_ROWS, (num_rows // 8) * 8)
    if num_rows >= 8 * _MIN_SPLIT_ROWS:
        # Enough work: keep >=8 grid steps so v7x's two TensorCores split the
        # batch and each core still double-buffers its DMAs.
        per_step = -(-num_rows // 8)
        per_step = ((per_step + 7) // 8) * 8
        tile = min(tile, max(_MIN_SPLIT_ROWS, per_step))
    return max(8, tile)


def iris_net_forward(x, w1, b1, w2, b2, *, compute_dtype=jnp.float32,
                     tile_rows=None):
    """Fused Linear(4,16) -> ReLU -> Linear(16,3) forward.

    x: (B, 4) f32;  w1: (16, 4), b1: (16,), w2: (3, 16), b2: (3,)  (PyTorch layout)
    Returns f32 logits of shape (B, 3).

    compute_dtype=float32 (default) matches PyTorch nn.Linear numerics;
    bfloat16 is the fast path (matmuls still accumulate in f32).
    """
    B = x.shape[0]
    b_pad = GROUP * (-(-B // GROUP))
    if b_pad != B:            # pad only the <32-sample tail; no-op when B % 32 == 0
        x = jnp.concatenate([x, jnp.zeros((b_pad - B, IN_F), x.dtype)], axis=0)
    rows = b_pad // GROUP
    xg = x.reshape(rows, LANE)   # zero-copy row-major repack: batch on the lanes

    if tile_rows is None:
        tr = _choose_tile_rows(rows)
    else:
        tr = min(int(tile_rows), rows)
        if tr < rows:
            tr = max(8, (tr // 8) * 8)           # keep the (8, 128) tiling rule
    grid = (pl.cdiv(rows, tr),)                  # ragged last block handled by Pallas

    # Small block-diagonal weights, built once and VMEM-resident across the grid.
    eye = jnp.eye(GROUP, dtype=compute_dtype)
    w1_big = jnp.kron(eye, w1.T.astype(compute_dtype))          # (128, 512)
    w2_big = jnp.kron(eye, w2.T.astype(compute_dtype))          # (512,  96)
    b1_big = jnp.tile(b1.astype(jnp.float32), GROUP).reshape(1, HID_W)
    b2_big = jnp.tile(b2.astype(jnp.float32), GROUP).reshape(1, OUT_W)
    # TODO(synk): pack w1/b1/w2/b2 into one operand to collapse 4 tiny one-time DMAs.

    out_g = pl.pallas_call(
        _iris_mlp_kernel,
        out_shape=jax.ShapeDtypeStruct((rows, OUT_W), jnp.float32),
        grid=grid,
        in_specs=[
            pl.BlockSpec((tr, LANE), lambda i: (i, 0)),          # x streamed over batch
            pl.BlockSpec((LANE, HID_W), lambda i: (0, 0)),       # weights stay resident
            pl.BlockSpec((1, HID_W), lambda i: (0, 0)),
            pl.BlockSpec((HID_W, OUT_W), lambda i: (0, 0)),
            pl.BlockSpec((1, OUT_W), lambda i: (0, 0)),
        ],
        out_specs=pl.BlockSpec((tr, OUT_W), lambda i: (i, 0)),
        compiler_params=pltpu.CompilerParams(
            dimension_semantics=("parallel",),     # batch steps split across TCs (v7x)
            vmem_limit_bytes=32 * 1024 * 1024,     # portable cap incl. v7x 64 MiB phys
        ),
    )(xg, w1_big, b1_big, w2_big, b2_big)

    out = out_g.reshape(b_pad, OUT_F)              # zero-copy back to (B, 3)
    return out if b_pad == B else out[:B]


def init_params(key):
    """Deterministic init mimicking nn.Linear's uniform(-1/sqrt(fan_in), +)."""
    k1, k2, k3, k4 = jax.random.split(key, 4)
    lim1 = 1.0 / jnp.sqrt(4.0)
    lim2 = 1.0 / jnp.sqrt(16.0)
    w1 = jax.random.uniform(k1, (HID_F, IN_F), jnp.float32, -lim1, lim1)   # (out, in)
    b1 = jax.random.uniform(k2, (HID_F,), jnp.float32, -lim1, lim1)
    w2 = jax.random.uniform(k3, (OUT_F, HID_F), jnp.float32, -lim2, lim2)  # (out, in)
    b2 = jax.random.uniform(k4, (OUT_F,), jnp.float32, -lim2, lim2)
    return w1, b1, w2, b2


def reference_forward(x, w1, b1, w2, b2, compute_dtype=jnp.float32):
    """Pure-JAX reference with PyTorch nn.Linear semantics (y = x @ W.T + b)."""
    f32 = jnp.float32
    prec = jax.lax.Precision.HIGHEST
    xc = x.astype(compute_dtype)
    h = jnp.dot(xc, w1.T.astype(compute_dtype),
                preferred_element_type=f32, precision=prec) + b1.astype(f32)
    h = jnp.maximum(h, 0.0)
    return jnp.dot(h.astype(compute_dtype), w2.T.astype(compute_dtype),
                   preferred_element_type=f32, precision=prec) + b2.astype(f32)


if __name__ == "__main__":
    key = jax.random.PRNGKey(0)
    kx, kp = jax.random.split(key)
    w1, b1, w2, b2 = init_params(kp)

    fwd = jax.jit(iris_net_forward, static_argnames=("compute_dtype", "tile_rows"))

    # 1) Small batch (Iris-like), f32 parity with the PyTorch module. B=8 -> 1 packed row.
    x = jax.random.normal(kx, (8, 4), jnp.float32)
    out = jax.block_until_ready(fwd(x, w1, b1, w2, b2))
    ref = reference_forward(x, w1, b1, w2, b2)
    assert out.shape == (8, 3)
    assert jnp.allclose(out, ref, atol=1e-4, rtol=1e-4)

    # 2) Ragged batch + multi-step grid (rows=10 -> tile 8, grid=2), still f32.
    x2 = jax.random.normal(kx, (300, 4), jnp.float32)
    out2 = jax.block_until_ready(fwd(x2, w1, b1, w2, b2))
    ref2 = reference_forward(x2, w1, b1, w2, b2)
    assert out2.shape == (300, 3)
    assert jnp.allclose(out2, ref2, atol=1e-4, rtol=1e-4)

    # 3) bf16 fast path on a larger ragged batch (tile ~1560 rows, grid=2).
    x3 = jax.random.normal(kx, (50049, 4), jnp.float32)
    out3 = jax.block_until_ready(
        fwd(x3, w1, b1, w2, b2, compute_dtype=jnp.bfloat16))
    ref3 = reference_forward(x3, w1, b1, w2, b2, compute_dtype=jnp.bfloat16)
    assert out3.shape == (50049, 3)
    assert jnp.allclose(out3, ref3, atol=1e-3, rtol=1e-3)

    print("KERNEL_OK")
</pallas_src>

<mosaic_0001>
module attributes {stable_mosaic.version = 11 : i64} {
  func.func @_iris_mlp_kernel(%arg0: i32, %arg1: memref<1x128xf32, #tpu.memory_space<vmem>>, %arg2: memref<128x512xf32, #tpu.memory_space<vmem>>, %arg3: memref<1x512xf32, #tpu.memory_space<vmem>>, %arg4: memref<512x96xf32, #tpu.memory_space<vmem>>, %arg5: memref<1x96xf32, #tpu.memory_space<vmem>>, %arg6: memref<1x96xf32, #tpu.memory_space<vmem>>) attributes {dimension_semantics = [#tpu.dimension_semantics<parallel>], iteration_bounds = array<i64: 1>, scalar_prefetch = 0 : i64, scratch_operands = 0 : i64, tpu.core_type = #tpu.core_type<tc>, window_params = [{transform_indices = @transform_0, window_bounds = array<i64: 1, 128>}, {pipeline_mode = #tpu.pipeline_mode<synchronous>, transform_indices = @transform_1, window_bounds = array<i64: 128, 512>}, {pipeline_mode = #tpu.pipeline_mode<synchronous>, transform_indices = @transform_2, window_bounds = array<i64: 1, 512>}, {pipeline_mode = #tpu.pipeline_mode<synchronous>, transform_indices = @transform_3, window_bounds = array<i64: 512, 96>}, {pipeline_mode = #tpu.pipeline_mode<synchronous>, transform_indices = @transform_4, window_bounds = array<i64: 1, 96>}, {transform_indices = @transform_5, window_bounds = array<i64: 1, 96>}]} {
    %c0 = arith.constant 0 : index
    %c0_0 = arith.constant 0 : index
    %0 = vector.load %arg1[%c0, %c0_0] : memref<1x128xf32, #tpu.memory_space<vmem>>, vector<1x128xf32>
    %c0_1 = arith.constant 0 : index
    %c0_2 = arith.constant 0 : index
    %1 = vector.load %arg2[%c0_1, %c0_2] : memref<128x512xf32, #tpu.memory_space<vmem>>, vector<128x512xf32>
    %cst = arith.constant dense<0.000000e+00> : vector<1x512xf32>
    %2 = tpu.matmul %0, %1, %cst {dimension_numbers = #tpu.dot_dimension_numbers<[1], [0], [0], [1], [0, 0, 1, 1], [], []>, precision = #tpu.contract_precision<fp32>} : vector<1x128xf32>, vector<128x512xf32>, vector<1x512xf32> -> vector<1x512xf32>
    %c0_3 = arith.constant 0 : index
    %c0_4 = arith.constant 0 : index
    %3 = vector.load %arg3[%c0_3, %c0_4] : memref<1x512xf32, #tpu.memory_space<vmem>>, vector<1x512xf32>
    %4 = arith.addf %2, %3 : vector<1x512xf32>
    %cst_5 = arith.constant 0.000000e+00 : f32
    %5 = vector.broadcast %cst_5 : f32 to vector<1x512xf32>
    %6 = arith.maximumf %4, %5 : vector<1x512xf32>
    %c0_6 = arith.constant 0 : index
    %c0_7 = arith.constant 0 : index
    %7 = vector.load %arg4[%c0_6, %c0_7] : memref<512x96xf32, #tpu.memory_space<vmem>>, vector<512x96xf32>
    %cst_8 = arith.constant dense<0.000000e+00> : vector<1x96xf32>
    %8 = tpu.matmul %6, %7, %cst_8 {dimension_numbers = #tpu.dot_dimension_numbers<[1], [0], [0], [1], [0, 0, 1, 1], [], []>, precision = #tpu.contract_precision<fp32>} : vector<1x512xf32>, vector<512x96xf32>, vector<1x96xf32> -> vector<1x96xf32>
    %c0_9 = arith.constant 0 : index
    %c0_10 = arith.constant 0 : index
    %9 = vector.load %arg5[%c0_9, %c0_10] : memref<1x96xf32, #tpu.memory_space<vmem>>, vector<1x96xf32>
    %10 = arith.addf %8, %9 : vector<1x96xf32>
    %c0_11 = arith.constant 0 : index
    %c0_12 = arith.constant 0 : index
    %11 = vector.load %arg6[%c0_11, %c0_12] : memref<1x96xf32, #tpu.memory_space<vmem>>, vector<1x96xf32>
    tpu.vector_store %arg6[%c0_11, %c0_12], %10 {strides = array<i32>} : memref<1x96xf32, #tpu.memory_space<vmem>>, vector<1x96xf32>,
    return
  }
  func.func @transform_0(%arg0: i32) -> (i32, i32) {
    %c0_i32 = arith.constant 0 : i32
    %c0_i32_0 = arith.constant 0 : i32
    return %arg0, %c0_i32 : i32, i32
  }
  func.func @transform_1(%arg0: i32) -> (i32, i32) {
    %c0_i32 = arith.constant 0 : i32
    %c0_i32_0 = arith.constant 0 : i32
    %c0_i32_1 = arith.constant 0 : i32
    return %c0_i32, %c0_i32_0 : i32, i32
  }
  func.func @transform_2(%arg0: i32) -> (i32, i32) {
    %c0_i32 = arith.constant 0 : i32
    %c0_i32_0 = arith.constant 0 : i32
    %c0_i32_1 = arith.constant 0 : i32
    return %c0_i32, %c0_i32_0 : i32, i32
  }
  func.func @transform_3(%arg0: i32) -> (i32, i32) {
    %c0_i32 = arith.constant 0 : i32
    %c0_i32_0 = arith.constant 0 : i32
    %c0_i32_1 = arith.constant 0 : i32
    return %c0_i32, %c0_i32_0 : i32, i32
  }
  func.func @transform_4(%arg0: i32) -> (i32, i32) {
    %c0_i32 = arith.constant 0 : i32
    %c0_i32_0 = arith.constant 0 : i32
    %c0_i32_1 = arith.constant 0 : i32
    return %c0_i32, %c0_i32_0 : i32, i32
  }
  func.func @transform_5(%arg0: i32) -> (i32, i32) {
    %c0_i32 = arith.constant 0 : i32
    %c0_i32_0 = arith.constant 0 : i32
    return %arg0, %c0_i32 : i32, i32
  }
}

</mosaic_0001>

<llo_original>
// kernel: tile.13
$region0: #{tile.13}
  #allocation0 [shape = 's32[1]{0}', space=sflag, size = 0x4, scoped, tag = 'scoped memory for tile.13']
  %s0 = inlined_call_operand.vmem [shape: f32[16], index: 0, kind: input, shape index: {}]
  %s1 = inlined_call_operand.vmem [shape: f32[32,16], index: 1, kind: output, shape index: {}]
  // Predicated region
  $region2: #{tile.13} parent=0 // pred_check
    _
  $region3: #{tile.13} parent=0 // pred_check_branch
    %3 = sbr.rel (0) target = $region5
  $region4: #{tile.13} parent=0 // pred_region
    _
  $region5: #{tile.13} parent=0 // pred_fallthru
    _
  %v4 = vld [vmem:[%s0] ss:$0 sm:$0xff]
  %5 = vst [vmem:[%s1] sm:$0xff] %v4
  %s6 = scalar_lea.vmem %s1, 8
  %7 = vst [vmem:[%s6] sm:$0xff] %v4
  %s8 = scalar_lea.vmem %s1, 16
  %9 = vst [vmem:[%s8] sm:$0xff] %v4
  %s10 = scalar_lea.vmem %s1, 24
  %11 = vst [vmem:[%s10] sm:$0xff] %v4

// kernel: tile.14
$region0: #{tile.14}
  %s0 = inlined_call_operand.vmem [shape: f32[32,16], index: 0, kind: input, shape index: {}]
  %s1 = inlined_call_operand.vmem [shape: f32[1,512], index: 1, kind: output, shape index: {}]
  $region1: #{tile.14} parent=0
    #allocation0 [shape = 'u8[16384]{0}', space=vmem, size = 0x4000, scoped, tag = 'scoped mem for output reshape']
    %v2 = vld [vmem:[%s0] ss:$8 sm:$0xf]
    %vm3 = vcmask 130048
    %4 = vst.msk [vmem:[#allocation0] ss:$8 sm:$0xf] %vm3, %v2
    %s5 = scalar_lea.vmem %s0, 7
    %v6 = vld [vmem:[%s5] ss:$8 sm:$0xf]
    %7 = vrot.lane.b32.xlu0 %v6, 112
    %v8 = vpop.permute.xlu0 %7
    %vm9 = vcmask 1048448
    %10 = vst.msk [vmem:[#allocation0] ss:$8 sm:$0xf] %vm9, %v8
    %s11 = scalar_lea.vmem %s0, 6
    %v12 = vld [vmem:[%s11] ss:$8 sm:$0xf]
    %13 = vrot.lane.b32.xlu0 %v12, 96
    %v14 = vpop.permute.xlu0 %13
    %vm15 = vcmask 917248
    %16 = vst.msk [vmem:[#allocation0] ss:$8 sm:$0xf] %vm15, %v14
    %s17 = scalar_lea.vmem %s0, 5
    %v18 = vld [vmem:[%s17] ss:$8 sm:$0xf]
    %19 = vrot.lane.b32.xlu0 %v18, 80
    %v20 = vpop.permute.xlu0 %19
    %vm21 = vcmask 786048
    %22 = vst.msk [vmem:[#allocation0] ss:$8 sm:$0xf] %vm21, %v20
    %s23 = scalar_lea.vmem %s0, 4
    %v24 = vld [vmem:[%s23] ss:$8 sm:$0xf]
    %25 = vrot.lane.b32.xlu0 %v24, 64
    %v26 = vpop.permute.xlu0 %25
    %vm27 = vcmask 654848
    %28 = vst.msk [vmem:[#allocation0] ss:$8 sm:$0xf] %vm27, %v26
    %s29 = scalar_lea.vmem %s0, 3
    %v30 = vld [vmem:[%s29] ss:$8 sm:$0xf]
    %31 = vrot.lane.b32.xlu0 %v30, 48
    %v32 = vpop.permute.xlu0 %31
    %vm33 = vcmask 523648
    %34 = vst.msk [vmem:[#allocation0] ss:$8 sm:$0xf] %vm33, %v32
    %s35 = scalar_lea.vmem %s0, 2
    %v36 = vld [vmem:[%s35] ss:$8 sm:$0xf]
    %37 = vrot.lane.b32.xlu0 %v36, 32
    %v38 = vpop.permute.xlu0 %37
    %vm39 = vcmask 392448
    %40 = vst.msk [vmem:[#allocation0] ss:$8 sm:$0xf] %vm39, %v38
    %s41 = scalar_lea.vmem %s0, 1
    %v42 = vld [vmem:[%s41] ss:$8 sm:$0xf]
    %43 = vrot.lane.b32.xlu0 %v42, 16
    %v44 = vpop.permute.xlu0 %43
    %vm45 = vcmask 261248
    %46 = vst.msk [vmem:[#allocation0] ss:$8 sm:$0xf] %vm45, %v44
    %s48 = ssub.s32 2, 1
    %v49 = vld [vmem:[#allocation0] sm:%s48]
    %s51 = ssub.s32 2, 1
    %52 = vst [vmem:[%s1] sm:%s51] %v49
    %s53 = scalar_lea.vmem [#allocation0], 8
    %v54 = vld [vmem:[%s53] sm:%s48]
    %s56 = ssub.s32 2, 1
    %s57 = scalar_lea.vmem %s1, 1
    %58 = vst [vmem:[%s57] sm:%s56] %v54
    %s59 = scalar_lea.vmem [#allocation0], 16
    %v60 = vld [vmem:[%s59] sm:%s48]
    %s62 = ssub.s32 2, 1
    %s63 = scalar_lea.vmem %s1, 2
    %64 = vst [vmem:[%s63] sm:%s62] %v60
    %s65 = scalar_lea.vmem [#allocation0], 24
    %v66 = vld [vmem:[%s65] sm:%s48]
    %s68 = ssub.s32 2, 1
    %s69 = scalar_lea.vmem %s1, 3
    %70 = vst [vmem:[%s69] sm:%s68] %v66

// kernel: tile.18
$region0: #{tile.18}
  #allocation0 [shape = 's32[1]{0}', space=sflag, size = 0x4, scoped, tag = 'scoped memory for tile.18']
  %s0 = inlined_call_operand.vmem [shape: f32[3], index: 0, kind: input, shape index: {}]
  %s1 = inlined_call_operand.vmem [shape: f32[32,3], index: 1, kind: output, shape index: {}]
  // Predicated region
  $region2: #{tile.18} parent=0 // pred_check
    _
  $region3: #{tile.18} parent=0 // pred_check_branch
    %3 = sbr.rel (0) target = $region5
  $region4: #{tile.18} parent=0 // pred_region
    _
  $region5: #{tile.18} parent=0 // pred_fallthru
    _
  %v4 = vld [vmem:[%s0] ss:$0 sm:$0xff]
  %5 = vst [vmem:[%s1] sm:$0xff] %v4
  %s6 = scalar_lea.vmem %s1, 8
  %7 = vst [vmem:[%s6] sm:$0xff] %v4
  %s8 = scalar_lea.vmem %s1, 16
  %9 = vst [vmem:[%s8] sm:$0xff] %v4
  %s10 = scalar_lea.vmem %s1, 24
  %11 = vst [vmem:[%s10] sm:$0xff] %v4

// kernel: tile.19
$region0: #{tile.19}
  %s0 = inlined_call_operand.vmem [shape: f32[32,3], index: 0, kind: input, shape index: {}]
  %s1 = inlined_call_operand.vmem [shape: f32[1,96], index: 1, kind: output, shape index: {}]
  $region1: #{tile.19} parent=0
    #allocation0 [shape = 'u8[4096]{0}', space=vmem, size = 0x1000, scoped, tag = 'scoped mem for output reshape']
    %v2 = vld [vmem:[%s0] sm:$0x1]
    %vm3 = vcmask 23552
    %4 = vst.msk [vmem:[#allocation0] sm:$0x1] %vm3, %v2
    %s5 = scalar_lea.vmem %s0, 31
    %v6 = vld [vmem:[%s5] sm:$0x1]
    %7 = vrot.lane.b32.xlu0 %v6, 93
    %v8 = vpop.permute.xlu0 %7
    %vm9 = vcmask 786152
    %10 = vst.msk [vmem:[#allocation0] sm:$0x1] %vm9, %v8
    %s11 = scalar_lea.vmem %s0, 30
    %v12 = vld [vmem:[%s11] sm:$0x1]
    %13 = vrot.lane.b32.xlu0 %v12, 90
    %v14 = vpop.permute.xlu0 %13
    %vm15 = vcmask 761552
    %16 = vst.msk [vmem:[#allocation0] sm:$0x1] %vm15, %v14
    %s17 = scalar_lea.vmem %s0, 29
    %v18 = vld [vmem:[%s17] sm:$0x1]
    %19 = vrot.lane.b32.xlu0 %v18, 87
    %v20 = vpop.permute.xlu0 %19
    %vm21 = vcmask 736952
    %22 = vst.msk [vmem:[#allocation0] sm:$0x1] %vm21, %v20
    %s23 = scalar_lea.vmem %s0, 28
    %v24 = vld [vmem:[%s23] sm:$0x1]
    %25 = vrot.lane.b32.xlu0 %v24, 84
    %v26 = vpop.permute.xlu0 %25
    %vm27 = vcmask 712352
    %28 = vst.msk [vmem:[#allocation0] sm:$0x1] %vm27, %v26
    %s29 = scalar_lea.vmem %s0, 27
    %v30 = vld [vmem:[%s29] sm:$0x1]
    %31 = vrot.lane.b32.xlu0 %v30, 81
    %v32 = vpop.permute.xlu0 %31
    %vm33 = vcmask 687752
    %34 = vst.msk [vmem:[#allocation0] sm:$0x1] %vm33, %v32
    %s35 = scalar_lea.vmem %s0, 26
    %v36 = vld [vmem:[%s35] sm:$0x1]
    %37 = vrot.lane.b32.xlu0 %v36, 78
    %v38 = vpop.permute.xlu0 %37
    %vm39 = vcmask 663152
    %40 = vst.msk [vmem:[#allocation0] sm:$0x1] %vm39, %v38
    %s41 = scalar_lea.vmem %s0, 25
    %v42 = vld [vmem:[%s41] sm:$0x1]
    %43 = vrot.lane.b32.xlu0 %v42, 75
    %v44 = vpop.permute.xlu0 %43
    %vm45 = vcmask 638552
    %46 = vst.msk [vmem:[#allocation0] sm:$0x1] %vm45, %v44
    %s47 = scalar_lea.vmem %s0, 24
    %v48 = vld [vmem:[%s47] sm:$0x1]
    %49 = vrot.lane.b32.xlu0 %v48, 72
    %v50 = vpop.permute.xlu0 %49
    %vm51 = vcmask 613952
    %52 = vst.msk [vmem:[#allocation0] sm:$0x1] %vm51, %v50
    %s53 = scalar_lea.vmem %s0, 23
    %v54 = vld [vmem:[%s53] sm:$0x1]
    %55 = vrot.lane.b32.xlu0 %v54, 69
    %v56 = vpop.permute.xlu0 %55
    %vm57 = vcmask 589352
    %58 = vst.msk [vmem:[#allocation0] sm:$0x1] %vm57, %v56
    %s59 = scalar_lea.vmem %s0, 22
    %v60 = vld [vmem:[%s59] sm:$0x1]
    %61 = vrot.lane.b32.xlu0 %v60, 66
    %v62 = vpop.permute.xlu0 %61
    %vm63 = vcmask 564752
    %64 = vst.msk [vmem:[#allocation0] sm:$0x1] %vm63, %v62
    %s65 = scalar_lea.vmem %s0, 21
    %v66 = vld [vmem:[%s65] sm:$0x1]
    %67 = vrot.lane.b32.xlu0 %v66, 63
    %v68 = vpop.permute.xlu0 %67
    %vm69 = vcmask 540152
    %70 = vst.msk [vmem:[#allocation0] sm:$0x1] %vm69, %v68
    %s71 = scalar_lea.vmem %s0, 20
    %v72 = vld [vmem:[%s71] sm:$0x1]
    %73 = vrot.lane.b32.xlu0 %v72, 60
    %v74 = vpop.permute.xlu0 %73
    %vm75 = vcmask 515552
    %76 = vst.msk [vmem:[#allocation0] sm:$0x1] %vm75, %v74
    %s77 = scalar_lea.vmem %s0, 19
    %v78 = vld [vmem:[%s77] sm:$0x1]
    %79 = vrot.lane.b32.xlu0 %v78, 57
    %v80 = vpop.permute.xlu0 %79
    %vm81 = vcmask 490952
    %82 = vst.msk [vmem:[#allocation0] sm:$0x1] %vm81, %v80
    %s83 = scalar_lea.vmem %s0, 18
    %v84 = vld [vmem:[%s83] sm:$0x1]
    %85 = vrot.lane.b32.xlu0 %v84, 54
    %v86 = vpop.permute.xlu0 %85
    %vm87 = vcmask 466352
    %88 = vst.msk [vmem:[#allocation0] sm:$0x1] %vm87, %v86
    %s89 = scalar_lea.vmem %s0, 17
    %v90 = vld [vmem:[%s89] sm:$0x1]
    %91 = vrot.lane.b32.xlu0 %v90, 51
    %v92 = vpop.permute.xlu0 %91
    %vm93 = vcmask 441752
    %94 = vst.msk [vmem:[#allocation0] sm:$0x1] %vm93, %v92
    %s95 = scalar_lea.vmem %s0, 16
    %v96 = vld [vmem:[%s95] sm:$0x1]
    %97 = vrot.lane.b32.xlu0 %v96, 48
    %v98 = vpop.permute.xlu0 %97
    %vm99 = vcmask 417152
    %100 = vst.msk [vmem:[#allocation0] sm:$0x1] %vm99, %v98
    %s101 = scalar_lea.vmem %s0, 15
    %v102 = vld [vmem:[%s101] sm:$0x1]
    %103 = vrot.lane.b32.xlu0 %v102, 45
    %v104 = vpop.permute.xlu0 %103
    %vm105 = vcmask 392552
    %106 = vst.msk [vmem:[#allocation0] sm:$0x1] %vm105, %v104
    %s107 = scalar_lea.vmem %s0, 14
    %v108 = vld [vmem:[%s107] sm:$0x1]
    %109 = vrot.lane.b32.xlu0 %v108, 42
    %v110 = vpop.permute.xlu0 %109
    %vm111 = vcmask 367952
    %112 = vst.msk [vmem:[#allocation0] sm:$0x1] %vm111, %v110
    %s113 = scalar_lea.vmem %s0, 13
    %v114 = vld [vmem:[%s113] sm:$0x1]
    %115 = vrot.lane.b32.xlu0 %v114, 39
    %v116 = vpop.permute.xlu0 %115
    %vm117 = vcmask 343352
    %118 = vst.msk [vmem:[#allocation0] sm:$0x1] %vm117, %v116
    %s119 = scalar_lea.vmem %s0, 12
    %v120 = vld [vmem:[%s119] sm:$0x1]
    %121 = vrot.lane.b32.xlu0 %v120, 36
    %v122 = vpop.permute.xlu0 %121
    %vm123 = vcmask 318752
    %124 = vst.msk [vmem:[#allocation0] sm:$0x1] %vm123, %v122
    %s125 = scalar_lea.vmem %s0, 11
    %v126 = vld [vmem:[%s125] sm:$0x1]
    %127 = vrot.lane.b32.xlu0 %v126, 33
    %v128 = vpop.permute.xlu0 %127
    %vm129 = vcmask 294152
    %130 = vst.msk [vmem:[#allocation0] sm:$0x1] %vm129, %v128
    %s131 = scalar_lea.vmem %s0, 10
    %v132 = vld [vmem:[%s131] sm:$0x1]
    %133 = vrot.lane.b32.xlu0 %v132, 30
    %v134 = vpop.permute.xlu0 %133
    %vm135 = vcmask 269552
    %136 = vst.msk [vmem:[#allocation0] sm:$0x1] %vm135, %v134
    %s137 = scalar_lea.vmem %s0, 9
    %v138 = vld [vmem:[%s137] sm:$0x1]
    %139 = vrot.lane.b32.xlu0 %v138, 27
    %v140 = vpop.permute.xlu0 %139
    %vm141 = vcmask 244952
    %142 = vst.msk [vmem:[#allocation0] sm:$0x1] %vm141, %v140
    %s143 = scalar_lea.vmem %s0, 8
    %v144 = vld [vmem:[%s143] sm:$0x1]
    %145 = vrot.lane.b32.xlu0 %v144, 24
    %v146 = vpop.permute.xlu0 %145
    %vm147 = vcmask 220352
    %148 = vst.msk [vmem:[#allocation0] sm:$0x1] %vm147, %v146
    %s149 = scalar_lea.vmem %s0, 7
    %v150 = vld [vmem:[%s149] sm:$0x1]
    %151 = vrot.lane.b32.xlu0 %v150, 21
    %v152 = vpop.permute.xlu0 %151
    %vm153 = vcmask 195752
    %154 = vst.msk [vmem:[#allocation0] sm:$0x1] %vm153, %v152
    %s155 = scalar_lea.vmem %s0, 6
    %v156 = vld [vmem:[%s155] sm:$0x1]
    %157 = vrot.lane.b32.xlu0 %v156, 18
    %v158 = vpop.permute.xlu0 %157
    %vm159 = vcmask 171152
    %160 = vst.msk [vmem:[#allocation0] sm:$0x1] %vm159, %v158
    %s161 = scalar_lea.vmem %s0, 5
    %v162 = vld [vmem:[%s161] sm:$0x1]
    %163 = vrot.lane.b32.xlu0 %v162, 15
    %v164 = vpop.permute.xlu0 %163
    %vm165 = vcmask 146552
    %166 = vst.msk [vmem:[#allocation0] sm:$0x1] %vm165, %v164
    %s167 = scalar_lea.vmem %s0, 4
    %v168 = vld [vmem:[%s167] sm:$0x1]
    %169 = vrot.lane.b32.xlu0 %v168, 12
    %v170 = vpop.permute.xlu0 %169
    %vm171 = vcmask 121952
    %172 = vst.msk [vmem:[#allocation0] sm:$0x1] %vm171, %v170
    %s173 = scalar_lea.vmem %s0, 3
    %v174 = vld [vmem:[%s173] sm:$0x1]
    %175 = vrot.lane.b32.xlu0 %v174, 9
    %v176 = vpop.permute.xlu0 %175
    %vm177 = vcmask 97352
    %178 = vst.msk [vmem:[#allocation0] sm:$0x1] %vm177, %v176
    %s179 = scalar_lea.vmem %s0, 2
    %v180 = vld [vmem:[%s179] sm:$0x1]
    %181 = vrot.lane.b32.xlu0 %v180, 6
    %v182 = vpop.permute.xlu0 %181
    %vm183 = vcmask 72752
    %184 = vst.msk [vmem:[#allocation0] sm:$0x1] %vm183, %v182
    %s185 = scalar_lea.vmem %s0, 1
    %v186 = vld [vmem:[%s185] sm:$0x1]
    %187 = vrot.lane.b32.xlu0 %v186, 3
    %v188 = vpop.permute.xlu0 %187
    %vm189 = vcmask 48152
    %190 = vst.msk [vmem:[#allocation0] sm:$0x1] %vm189, %v188
    %s192 = ssub.s32 2, 1
    %v193 = vld [vmem:[#allocation0] sm:%s192]
    %s195 = ssub.s32 2, 1
    %196 = vst [vmem:[%s1] sm:%s195] %v193

// kernel: iris_net_forward.1
$region0: #{iris_net_forward.1}
  #allocation0 [shape = 'u32[]', space=smem, size = 0x4, offset = 0x4, fixed_abs, tag = 'smem constant byte address 0x4 - core index']
  #allocation1 [shape = 'u32[72,128]{1,0:T(1,128)}', space=vmem, size = 0x9000, scoped, tag = 'internal scratch']
  %s0 = inlined_call_operand.vmem [shape: f32[1,128], index: 0, kind: input, shape index: {}]
  %s1 = inlined_call_operand.vmem [shape: f32[128,512], index: 1, kind: input, shape index: {}]
  %s2 = inlined_call_operand.vmem [shape: f32[1,512], index: 2, kind: input, shape index: {}]
  %s3 = inlined_call_operand.vmem [shape: f32[512,96], index: 3, kind: input, shape index: {}]
  %s4 = inlined_call_operand.vmem [shape: f32[1,96], index: 4, kind: input, shape index: {}]
  %s5 = inlined_call_operand.vmem [shape: f32[1,96], index: 5, kind: output, shape index: {}]
  %s6 = sld [smem:[#allocation0]]
  $region30: #{iris_net_forward.1} parent=0
    _
  %s8 = ssub.s32 1, %s6
  %s9 = scalar_select 0, %s8, %s6
  // Predicated region
  $region2: #{iris_net_forward.1} parent=0 // pred_check
    _
  $region3: #{iris_net_forward.1} parent=0 // pred_check_branch
    %11 = sbr.rel (0) target = $region5
  $region4: #{iris_net_forward.1} parent=0 // pred_region
    _
  $region5: #{iris_net_forward.1} parent=0 // pred_fallthru
    _
  // Predicated region
  $region6: #{iris_net_forward.1} parent=0 // pred_check
    _
  $region7: #{iris_net_forward.1} parent=0 // pred_check_branch
    %13 = sbr.rel (0) target = $region9
  $region8: #{iris_net_forward.1} parent=0 // pred_region
    _
  $region9: #{iris_net_forward.1} parent=0 // pred_fallthru
    _
  // Predicated region
  $region10: #{iris_net_forward.1} parent=0 // pred_check
    _
  $region11: #{iris_net_forward.1} parent=0 // pred_check_branch
    %15 = sbr.rel (0) target = $region13
  $region12: #{iris_net_forward.1} parent=0 // pred_region
    _
  $region13: #{iris_net_forward.1} parent=0 // pred_fallthru
    _
  // Predicated region
  $region14: #{iris_net_forward.1} parent=0 // pred_check
    _
  $region15: #{iris_net_forward.1} parent=0 // pred_check_branch
    %17 = sbr.rel (0) target = $region17
  $region16: #{iris_net_forward.1} parent=0 // pred_region
    _
  $region17: #{iris_net_forward.1} parent=0 // pred_fallthru
    _
  // Predicated region
  $region18: #{iris_net_forward.1} parent=0 // pred_check
    _
  $region19: #{iris_net_forward.1} parent=0 // pred_check_branch
    %19 = sbr.rel (0) target = $region21
  $region20: #{iris_net_forward.1} parent=0 // pred_region
    _
  $region21: #{iris_net_forward.1} parent=0 // pred_fallthru
    _
  %v20 = vld [vmem:[%s0] sm:$0x1]
  %v21 = vld [vmem:[%s1] sm:$0xff]
  %v22 = vld [vmem:[%s1 + $0x8] sm:$0xff]
  %v23 = vld [vmem:[%s1 + $0x10] sm:$0xff]
  %v24 = vld [vmem:[%s1 + $0x18] sm:$0xff]
  %v25 = vld [vmem:[%s1 + $0x20] sm:$0xff]
  %v26 = vld [vmem:[%s1 + $0x28] sm:$0xff]
  %v27 = vld [vmem:[%s1 + $0x30] sm:$0xff]
  %v28 = vld [vmem:[%s1 + $0x38] sm:$0xff]
  %v29 = vld [vmem:[%s1 + $0x40] sm:$0xff]
  %v30 = vld [vmem:[%s1 + $0x48] sm:$0xff]
  %v31 = vld [vmem:[%s1 + $0x50] sm:$0xff]
  %v32 = vld [vmem:[%s1 + $0x58] sm:$0xff]
  %v33 = vld [vmem:[%s1 + $0x60] sm:$0xff]
  %v34 = vld [vmem:[%s1 + $0x68] sm:$0xff]
  %v35 = vld [vmem:[%s1 + $0x70] sm:$0xff]
  %v36 = vld [vmem:[%s1 + $0x78] sm:$0xff]
  %v37 = vld [vmem:[%s1 + $0x80] sm:$0xff]
  %v38 = vld [vmem:[%s1 + $0x88] sm:$0xff]
  %v39 = vld [vmem:[%s1 + $0x90] sm:$0xff]
  %v40 = vld [vmem:[%s1 + $0x98] sm:$0xff]
  %v41 = vld [vmem:[%s1 + $0xa0] sm:$0xff]
  %v42 = vld [vmem:[%s1 + $0xa8] sm:$0xff]
  %v43 = vld [vmem:[%s1 + $0xb0] sm:$0xff]
  %v44 = vld [vmem:[%s1 + $0xb8] sm:$0xff]
  %v45 = vld [vmem:[%s1 + $0xc0] sm:$0xff]
  %v46 = vld [vmem:[%s1 + $0xc8] sm:$0xff]
  %v47 = vld [vmem:[%s1 + $0xd0] sm:$0xff]
  %v48 = vld [vmem:[%s1 + $0xd8] sm:$0xff]
  %v49 = vld [vmem:[%s1 + $0xe0] sm:$0xff]
  %v50 = vld [vmem:[%s1 + $0xe8] sm:$0xff]
  %v51 = vld [vmem:[%s1 + $0xf0] sm:$0xff]
  %v52 = vld [vmem:[%s1 + $0xf8] sm:$0xff]
  %v53 = vld [vmem:[%s1 + $0x100] sm:$0xff]
  %v54 = vld [vmem:[%s1 + $0x108] sm:$0xff]
  %v55 = vld [vmem:[%s1 + $0x110] sm:$0xff]
  %v56 = vld [vmem:[%s1 + $0x118] sm:$0xff]
  %v57 = vld [vmem:[%s1 + $0x120] sm:$0xff]
  %v58 = vld [vmem:[%s1 + $0x128] sm:$0xff]
  %v59 = vld [vmem:[%s1 + $0x130] sm:$0xff]
  %v60 = vld [vmem:[%s1 + $0x138] sm:$0xff]
  %v61 = vld [vmem:[%s1 + $0x140] sm:$0xff]
  %v62 = vld [vmem:[%s1 + $0x148] sm:$0xff]
  %v63 = vld [vmem:[%s1 + $0x150] sm:$0xff]
  %v64 = vld [vmem:[%s1 + $0x158] sm:$0xff]
  %v65 = vld [vmem:[%s1 + $0x160] sm:$0xff]
  %v66 = vld [vmem:[%s1 + $0x168] sm:$0xff]
  %v67 = vld [vmem:[%s1 + $0x170] sm:$0xff]
  %v68 = vld [vmem:[%s1 + $0x178] sm:$0xff]
  %v69 = vld [vmem:[%s1 + $0x180] sm:$0xff]
  %v70 = vld [vmem:[%s1 + $0x188] sm:$0xff]
  %v71 = vld [vmem:[%s1 + $0x190] sm:$0xff]
  %v72 = vld [vmem:[%s1 + $0x198] sm:$0xff]
  %v73 = vld [vmem:[%s1 + $0x1a0] sm:$0xff]
  %v74 = vld [vmem:[%s1 + $0x1a8] sm:$0xff]
  %v75 = vld [vmem:[%s1 + $0x1b0] sm:$0xff]
  %v76 = vld [vmem:[%s1 + $0x1b8] sm:$0xff]
  %v77 = vld [vmem:[%s1 + $0x1c0] sm:$0xff]
  %v78 = vld [vmem:[%s1 + $0x1c8] sm:$0xff]
  %v79 = vld [vmem:[%s1 + $0x1d0] sm:$0xff]
  %v80 = vld [vmem:[%s1 + $0x1d8] sm:$0xff]
  %v81 = vld [vmem:[%s1 + $0x1e0] sm:$0xff]
  %v82 = vld [vmem:[%s1 + $0x1e8] sm:$0xff]
  %v83 = vld [vmem:[%s1 + $0x1f0] sm:$0xff]
  %v84 = vld [vmem:[%s1 + $0x1f8] sm:$0xff]
  %v85 = vld [vmem:[%s2] sm:$0xf]
  %v87 = vperm.slane %v85, 0
  %v88 = vperm.slane %v85, 1
  %v89 = vperm.slane %v85, 2
  %v90 = vperm.slane %v85, 3
  %v95 = vand.u32 %v81, 4294901760
  %96 = vmatpush.msra.mxu0 %v95
  %v97 = vand.u32 %v77, 4294901760
  %98 = vmatpush.msra.mxu0 %v97
  %v99 = vand.u32 %v73, 4294901760
  %100 = vmatpush.msra.mxu0 %v99
  %v101 = vand.u32 %v69, 4294901760
  %102 = vmatpush.msra.mxu0 %v101
  %v103 = vand.u32 %v65, 4294901760
  %104 = vmatpush.msra.mxu0 %v103
  %v105 = vand.u32 %v61, 4294901760
  %106 = vmatpush.msra.mxu0 %v105
  %v107 = vand.u32 %v57, 4294901760
  %108 = vmatpush.msra.mxu0 %v107
  %v109 = vand.u32 %v53, 4294901760
  %110 = vmatpush.msra.mxu0 %v109
  %v111 = vand.u32 %v49, 4294901760
  %112 = vmatpush.msra.mxu0 %v111
  %v113 = vand.u32 %v45, 4294901760
  %114 = vmatpush.msra.mxu0 %v113
  %v115 = vand.u32 %v41, 4294901760
  %116 = vmatpush.msra.mxu0 %v115
  %v117 = vand.u32 %v37, 4294901760
  %118 = vmatpush.msra.mxu0 %v117
  %v119 = vand.u32 %v33, 4294901760
  %120 = vmatpush.msra.mxu0 %v119
  %v121 = vand.u32 %v29, 4294901760
  %122 = vmatpush.msra.mxu0 %v121
  %v123 = vand.u32 %v25, 4294901760
  %124 = vmatpush.msra.mxu0 %v123
  %v125 = vand.u32 %v21, 4294901760
  %126 = vmatpush.msra.mxu0 %v125
  %v127 = vand.u32 %v20, 4294901760
  %v128 = vsub.f32 %v20, %v127
  %v129 = vand.u32 %v128, 4294901760
  %v130 = vsub.f32 %v128, %v129
  %v131 = vand.u32 %v130, 4294901760
  %132 = vmatmul.f32.gmra.mxu0 %v131
  %v133 = vpop.f32.mrf.mxu0
  %v134 = vadd.f32 %v87, %v133
  %135 = vdwg.mxu0
  %v136 = vand.u32 %v81, 4294901760
  %v137 = vsub.f32 %v81, %v136
  %v138 = vand.u32 %v137, 4294901760
  %v139 = vsub.f32 %v137, %v138
  %v140 = vand.u32 %v139, 4294901760
  %141 = vmatpush.msra.mxu0 %v140
  %v142 = vand.u32 %v77, 4294901760
  %v143 = vsub.f32 %v77, %v142
  %v144 = vand.u32 %v143, 4294901760
  %v145 = vsub.f32 %v143, %v144
  %v146 = vand.u32 %v145, 4294901760
  %147 = vmatpush.msra.mxu0 %v146
  %v148 = vand.u32 %v73, 4294901760
  %v149 = vsub.f32 %v73, %v148
  %v150 = vand.u32 %v149, 4294901760
  %v151 = vsub.f32 %v149, %v150
  %v152 = vand.u32 %v151, 4294901760
  %153 = vmatpush.msra.mxu0 %v152
  %v154 = vand.u32 %v69, 4294901760
  %v155 = vsub.f32 %v69, %v154
  %v156 = vand.u32 %v155, 4294901760
  %v157 = vsub.f32 %v155, %v156
  %v158 = vand.u32 %v157, 4294901760
  %159 = vmatpush.msra.mxu0 %v158
  %v160 = vand.u32 %v65, 4294901760
  %v161 = vsub.f32 %v65, %v160
  %v162 = vand.u32 %v161, 4294901760
  %v163 = vsub.f32 %v161, %v162
  %v164 = vand.u32 %v163, 4294901760
  %165 = vmatpush.msra.mxu0 %v164
  %v166 = vand.u32 %v61, 4294901760
  %v167 = vsub.f32 %v61, %v166
  %v168 = vand.u32 %v167, 4294901760
  %v169 = vsub.f32 %v167, %v168
  %v170 = vand.u32 %v169, 4294901760
  %171 = vmatpush.msra.mxu0 %v170
  %v172 = vand.u32 %v57, 4294901760
  %v173 = vsub.f32 %v57, %v172
  %v174 = vand.u32 %v173, 4294901760
  %v175 = vsub.f32 %v173, %v174
  %v176 = vand.u32 %v175, 4294901760
  %177 = vmatpush.msra.mxu0 %v176
  %v178 = vand.u32 %v53, 4294901760
  %v179 = vsub.f32 %v53, %v178
  %v180 = vand.u32 %v179, 4294901760
  %v181 = vsub.f32 %v179, %v180
  %v182 = vand.u32 %v181, 4294901760
  %183 = vmatpush.msra.mxu0 %v182
  %v184 = vand.u32 %v49, 4294901760
  %v185 = vsub.f32 %v49, %v184
  %v186 = vand.u32 %v185, 4294901760
  %v187 = vsub.f32 %v185, %v186
  %v188 = vand.u32 %v187, 4294901760
  %189 = vmatpush.msra.mxu0 %v188
  %v190 = vand.u32 %v45, 4294901760
  %v191 = vsub.f32 %v45, %v190
  %v192 = vand.u32 %v191, 4294901760
  %v193 = vsub.f32 %v191, %v192
  %v194 = vand.u32 %v193, 4294901760
  %195 = vmatpush.msra.mxu0 %v194
  %v196 = vand.u32 %v41, 4294901760
  %v197 = vsub.f32 %v41, %v196
  %v198 = vand.u32 %v197, 4294901760
  %v199 = vsub.f32 %v197, %v198
  %v200 = vand.u32 %v199, 4294901760
  %201 = vmatpush.msra.mxu0 %v200
  %v202 = vand.u32 %v37, 4294901760
  %v203 = vsub.f32 %v37, %v202
  %v204 = vand.u32 %v203, 4294901760
  %v205 = vsub.f32 %v203, %v204
  %v206 = vand.u32 %v205, 4294901760
  %207 = vmatpush.msra.mxu0 %v206
  %v208 = vand.u32 %v33, 4294901760
  %v209 = vsub.f32 %v33, %v208
  %v210 = vand.u32 %v209, 4294901760
  %v211 = vsub.f32 %v209, %v210
  %v212 = vand.u32 %v211, 4294901760
  %213 = vmatpush.msra.mxu0 %v212
  %v214 = vand.u32 %v29, 4294901760
  %v215 = vsub.f32 %v29, %v214
  %v216 = vand.u32 %v215, 4294901760
  %v217 = vsub.f32 %v215, %v216
  %v218 = vand.u32 %v217, 4294901760
  %219 = vmatpush.msra.mxu0 %v218
  %v220 = vand.u32 %v25, 4294901760
  %v221 = vsub.f32 %v25, %v220
  %v222 = vand.u32 %v221, 4294901760
  %v223 = vsub.f32 %v221, %v222
  %v224 = vand.u32 %v223, 4294901760
  %225 = vmatpush.msra.mxu0 %v224
  %v226 = vand.u32 %v21, 4294901760
  %v227 = vsub.f32 %v21, %v226
  %v228 = vand.u32 %v227, 4294901760
  %v229 = vsub.f32 %v227, %v228
  %v230 = vand.u32 %v229, 4294901760
  %231 = vmatpush.msra.mxu0 %v230
  %v232 = vand.u32 %v20, 4294901760
  %233 = vmatmul.f32.gmra.mxu0 %v232
  %v234 = vpop.f32.mrf.mxu0
  %v235 = vadd.f32 %v134, %v234
  %236 = vdwg.mxu0
  %v237 = vand.u32 %v81, 4294901760
  %v238 = vsub.f32 %v81, %v237
  %239 = vmatpush.msra.mxu0 %v238
  %v240 = vand.u32 %v77, 4294901760
  %v241 = vsub.f32 %v77, %v240
  %242 = vmatpush.msra.mxu0 %v241
  %v243 = vand.u32 %v73, 4294901760
  %v244 = vsub.f32 %v73, %v243
  %245 = vmatpush.msra.mxu0 %v244
  %v246 = vand.u32 %v69, 4294901760
  %v247 = vsub.f32 %v69, %v246
  %248 = vmatpush.msra.mxu0 %v247
  %v249 = vand.u32 %v65, 4294901760
  %v250 = vsub.f32 %v65, %v249
  %251 = vmatpush.msra.mxu0 %v250
  %v252 = vand.u32 %v61, 4294901760
  %v253 = vsub.f32 %v61, %v252
  %254 = vmatpush.msra.mxu0 %v253
  %v255 = vand.u32 %v57, 4294901760
  %v256 = vsub.f32 %v57, %v255
  %257 = vmatpush.msra.mxu0 %v256
  %v258 = vand.u32 %v53, 4294901760
  %v259 = vsub.f32 %v53, %v258
  %260 = vmatpush.msra.mxu0 %v259
  %v261 = vand.u32 %v49, 4294901760
  %v262 = vsub.f32 %v49, %v261
  %263 = vmatpush.msra.mxu0 %v262
  %v264 = vand.u32 %v45, 4294901760
  %v265 = vsub.f32 %v45, %v264
  %266 = vmatpush.msra.mxu0 %v265
  %v267 = vand.u32 %v41, 4294901760
  %v268 = vsub.f32 %v41, %v267
  %269 = vmatpush.msra.mxu0 %v268
  %v270 = vand.u32 %v37, 4294901760
  %v271 = vsub.f32 %v37, %v270
  %272 = vmatpush.msra.mxu0 %v271
  %v273 = vand.u32 %v33, 4294901760
  %v274 = vsub.f32 %v33, %v273
  %275 = vmatpush.msra.mxu0 %v274
  %v276 = vand.u32 %v29, 4294901760
  %v277 = vsub.f32 %v29, %v276
  %278 = vmatpush.msra.mxu0 %v277
  %v279 = vand.u32 %v25, 4294901760
  %v280 = vsub.f32 %v25, %v279
  %281 = vmatpush.msra.mxu0 %v280
  %v282 = vand.u32 %v21, 4294901760
  %v283 = vsub.f32 %v21, %v282
  %284 = vmatpush.msra.mxu0 %v283
  %v285 = vand.u32 %v20, 4294901760
  %v286 = vsub.f32 %v20, %v285
  %287 = vmatmul.f32.gmra.mxu0 %v286
  %v288 = vpop.f32.mrf.mxu0
  %v289 = vadd.f32 %v235, %v288
  %290 = vdwg.mxu0
  %v291 = vand.u32 %v81, 4294901760
  %292 = vmatpush.msra.mxu0 %v291
  %v293 = vand.u32 %v77, 4294901760
  %294 = vmatpush.msra.mxu0 %v293
  %v295 = vand.u32 %v73, 4294901760
  %296 = vmatpush.msra.mxu0 %v295
  %v297 = vand.u32 %v69, 4294901760
  %298 = vmatpush.msra.mxu0 %v297
  %v299 = vand.u32 %v65, 4294901760
  %300 = vmatpush.msra.mxu0 %v299
  %v301 = vand.u32 %v61, 4294901760
  %302 = vmatpush.msra.mxu0 %v301
  %v303 = vand.u32 %v57, 4294901760
  %304 = vmatpush.msra.mxu0 %v303
  %v305 = vand.u32 %v53, 4294901760
  %306 = vmatpush.msra.mxu0 %v305
  %v307 = vand.u32 %v49, 4294901760
  %308 = vmatpush.msra.mxu0 %v307
  %v309 = vand.u32 %v45, 4294901760
  %310 = vmatpush.msra.mxu0 %v309
  %v311 = vand.u32 %v41, 4294901760
  %312 = vmatpush.msra.mxu0 %v311
  %v313 = vand.u32 %v37, 4294901760
  %314 = vmatpush.msra.mxu0 %v313
  %v315 = vand.u32 %v33, 4294901760
  %316 = vmatpush.msra.mxu0 %v315
  %v317 = vand.u32 %v29, 4294901760
  %318 = vmatpush.msra.mxu0 %v317
  %v319 = vand.u32 %v25, 4294901760
  %320 = vmatpush.msra.mxu0 %v319
  %v321 = vand.u32 %v21, 4294901760
  %322 = vmatpush.msra.mxu0 %v321
  %v323 = vand.u32 %v20, 4294901760
  %v324 = vsub.f32 %v20, %v323
  %v325 = vand.u32 %v324, 4294901760
  %326 = vmatmul.f32.gmra.mxu0 %v325
  %v327 = vpop.f32.mrf.mxu0
  %v328 = vadd.f32 %v289, %v327
  %329 = vdwg.mxu0
  %v330 = vand.u32 %v81, 4294901760
  %v331 = vsub.f32 %v81, %v330
  %v332 = vand.u32 %v331, 4294901760
  %333 = vmatpush.msra.mxu0 %v332
  %v334 = vand.u32 %v77, 4294901760
  %v335 = vsub.f32 %v77, %v334
  %v336 = vand.u32 %v335, 4294901760
  %337 = vmatpush.msra.mxu0 %v336
  %v338 = vand.u32 %v73, 4294901760
  %v339 = vsub.f32 %v73, %v338
  %v340 = vand.u32 %v339, 4294901760
  %341 = vmatpush.msra.mxu0 %v340
  %v342 = vand.u32 %v69, 4294901760
  %v343 = vsub.f32 %v69, %v342
  %v344 = vand.u32 %v343, 4294901760
  %345 = vmatpush.msra.mxu0 %v344
  %v346 = vand.u32 %v65, 4294901760
  %v347 = vsub.f32 %v65, %v346
  %v348 = vand.u32 %v347, 4294901760
  %349 = vmatpush.msra.mxu0 %v348
  %v350 = vand.u32 %v61, 4294901760
  %v351 = vsub.f32 %v61, %v350
  %v352 = vand.u32 %v351, 4294901760
  %353 = vmatpush.msra.mxu0 %v352
  %v354 = vand.u32 %v57, 4294901760
  %v355 = vsub.f32 %v57, %v354
  %v356 = vand.u32 %v355, 4294901760
  %357 = vmatpush.msra.mxu0 %v356
  %v358 = vand.u32 %v53, 4294901760
  %v359 = vsub.f32 %v53, %v358
  %v360 = vand.u32 %v359, 4294901760
  %361 = vmatpush.msra.mxu0 %v360
  %v362 = vand.u32 %v49, 4294901760
  %v363 = vsub.f32 %v49, %v362
  %v364 = vand.u32 %v363, 4294901760
  %365 = vmatpush.msra.mxu0 %v364
  %v366 = vand.u32 %v45, 4294901760
  %v367 = vsub.f32 %v45, %v366
  %v368 = vand.u32 %v367, 4294901760
  %369 = vmatpush.msra.mxu0 %v368
  %v370 = vand.u32 %v41, 4294901760
  %v371 = vsub.f32 %v41, %v370
  %v372 = vand.u32 %v371, 4294901760
  %373 = vmatpush.msra.mxu0 %v372
  %v374 = vand.u32 %v37, 4294901760
  %v375 = vsub.f32 %v37, %v374
  %v376 = vand.u32 %v375, 4294901760
  %377 = vmatpush.msra.mxu0 %v376
  %v378 = vand.u32 %v33, 4294901760
  %v379 = vsub.f32 %v33, %v378
  %v380 = vand.u32 %v379, 4294901760
  %381 = vmatpush.msra.mxu0 %v380
  %v382 = vand.u32 %v29, 4294901760
  %v383 = vsub.f32 %v29, %v382
  %v384 = vand.u32 %v383, 4294901760
  %385 = vmatpush.msra.mxu0 %v384
  %v386 = vand.u32 %v25, 4294901760
  %v387 = vsub.f32 %v25, %v386
  %v388 = vand.u32 %v387, 4294901760
  %389 = vmatpush.msra.mxu0 %v388
  %v390 = vand.u32 %v21, 4294901760
  %v391 = vsub.f32 %v21, %v390
  %v392 = vand.u32 %v391, 4294901760
  %393 = vmatpush.msra.mxu0 %v392
  %v394 = vand.u32 %v20, 4294901760
  %395 = vmatmul.f32.gmra.mxu0 %v394
  %v396 = vpop.f32.mrf.mxu0
  %v397 = vadd.f32 %v328, %v396
  %398 = vdwg.mxu0
  %v399 = vand.u32 %v81, 4294901760
  %400 = vmatpush.msra.mxu0 %v399
  %v401 = vand.u32 %v77, 4294901760
  %402 = vmatpush.msra.mxu0 %v401
  %v403 = vand.u32 %v73, 4294901760
  %404 = vmatpush.msra.mxu0 %v403
  %v405 = vand.u32 %v69, 4294901760
  %406 = vmatpush.msra.mxu0 %v405
  %v407 = vand.u32 %v65, 4294901760
  %408 = vmatpush.msra.mxu0 %v407
  %v409 = vand.u32 %v61, 4294901760
  %410 = vmatpush.msra.mxu0 %v409
  %v411 = vand.u32 %v57, 4294901760
  %412 = vmatpush.msra.mxu0 %v411
  %v413 = vand.u32 %v53, 4294901760
  %414 = vmatpush.msra.mxu0 %v413
  %v415 = vand.u32 %v49, 4294901760
  %416 = vmatpush.msra.mxu0 %v415
  %v417 = vand.u32 %v45, 4294901760
  %418 = vmatpush.msra.mxu0 %v417
  %v419 = vand.u32 %v41, 4294901760
  %420 = vmatpush.msra.mxu0 %v419
  %v421 = vand.u32 %v37, 4294901760
  %422 = vmatpush.msra.mxu0 %v421
  %v423 = vand.u32 %v33, 4294901760
  %424 = vmatpush.msra.mxu0 %v423
  %v425 = vand.u32 %v29, 4294901760
  %426 = vmatpush.msra.mxu0 %v425
  %v427 = vand.u32 %v25, 4294901760
  %428 = vmatpush.msra.mxu0 %v427
  %v429 = vand.u32 %v21, 4294901760
  %430 = vmatpush.msra.mxu0 %v429
  %v431 = vand.u32 %v20, 4294901760
  %432 = vmatmul.f32.gmra.mxu0 %v431
  %v433 = vpop.f32.mrf.mxu0
  %v434 = vadd.f32 %v397, %v433
  %435 = vdwg.mxu0
  %v436 = vand.u32 %v82, 4294901760
  %437 = vmatpush.msra.mxu0 %v436
  %v438 = vand.u32 %v78, 4294901760
  %439 = vmatpush.msra.mxu0 %v438
  %v440 = vand.u32 %v74, 4294901760
  %441 = vmatpush.msra.mxu0 %v440
  %v442 = vand.u32 %v70, 4294901760
  %443 = vmatpush.msra.mxu0 %v442
  %v444 = vand.u32 %v66, 4294901760
  %445 = vmatpush.msra.mxu0 %v444
  %v446 = vand.u32 %v62, 4294901760
  %447 = vmatpush.msra.mxu0 %v446
  %v448 = vand.u32 %v58, 4294901760
  %449 = vmatpush.msra.mxu0 %v448
  %v450 = vand.u32 %v54, 4294901760
  %451 = vmatpush.msra.mxu0 %v450
  %v452 = vand.u32 %v50, 4294901760
  %453 = vmatpush.msra.mxu0 %v452
  %v454 = vand.u32 %v46, 4294901760
  %455 = vmatpush.msra.mxu0 %v454
  %v456 = vand.u32 %v42, 4294901760
  %457 = vmatpush.msra.mxu0 %v456
  %v458 = vand.u32 %v38, 4294901760
  %459 = vmatpush.msra.mxu0 %v458
  %v460 = vand.u32 %v34, 4294901760
  %461 = vmatpush.msra.mxu0 %v460
  %v462 = vand.u32 %v30, 4294901760
  %463 = vmatpush.msra.mxu0 %v462
  %v464 = vand.u32 %v26, 4294901760
  %465 = vmatpush.msra.mxu0 %v464
  %v466 = vand.u32 %v22, 4294901760
  %467 = vmatpush.msra.mxu0 %v466
  %v468 = vand.u32 %v20, 4294901760
  %v469 = vsub.f32 %v20, %v468
  %v470 = vand.u32 %v469, 4294901760
  %v471 = vsub.f32 %v469, %v470
  %v472 = vand.u32 %v471, 4294901760
  %473 = vmatmul.f32.gmra.mxu0 %v472
  %v474 = vpop.f32.mrf.mxu0
  %v475 = vadd.f32 %v88, %v474
  %476 = vdwg.mxu0
  %v477 = vand.u32 %v82, 4294901760
  %v478 = vsub.f32 %v82, %v477
  %v479 = vand.u32 %v478, 4294901760
  %v480 = vsub.f32 %v478, %v479
  %v481 = vand.u32 %v480, 4294901760
  %482 = vmatpush.msra.mxu0 %v481
  %v483 = vand.u32 %v78, 4294901760
  %v484 = vsub.f32 %v78, %v483
  %v485 = vand.u32 %v484, 4294901760
  %v486 = vsub.f32 %v484, %v485
  %v487 = vand.u32 %v486, 4294901760
  %488 = vmatpush.msra.mxu0 %v487
  %v489 = vand.u32 %v74, 4294901760
  %v490 = vsub.f32 %v74, %v489
  %v491 = vand.u32 %v490, 4294901760
  %v492 = vsub.f32 %v490, %v491
  %v493 = vand.u32 %v492, 4294901760
  %494 = vmatpush.msra.mxu0 %v493
  %v495 = vand.u32 %v70, 4294901760
  %v496 = vsub.f32 %v70, %v495
  %v497 = vand.u32 %v496, 4294901760
  %v498 = vsub.f32 %v496, %v497
  %v499 = vand.u32 %v498, 4294901760
  %500 = vmatpush.msra.mxu0 %v499
  %v501 = vand.u32 %v66, 4294901760
  %v502 = vsub.f32 %v66, %v501
  %v503 = vand.u32 %v502, 4294901760
  %v504 = vsub.f32 %v502, %v503
  %v505 = vand.u32 %v504, 4294901760
  %506 = vmatpush.msra.mxu0 %v505
  %v507 = vand.u32 %v62, 4294901760
  %v508 = vsub.f32 %v62, %v507
  %v509 = vand.u32 %v508, 4294901760
  %v510 = vsub.f32 %v508, %v509
  %v511 = vand.u32 %v510, 4294901760
  %512 = vmatpush.msra.mxu0 %v511
  %v513 = vand.u32 %v58, 4294901760
  %v514 = vsub.f32 %v58, %v513
  %v515 = vand.u32 %v514, 4294901760
  %v516 = vsub.f32 %v514, %v515
  %v517 = vand.u32 %v516, 4294901760
  %518 = vmatpush.msra.mxu0 %v517
  %v519 = vand.u32 %v54, 4294901760
  %v520 = vsub.f32 %v54, %v519
  %v521 = vand.u32 %v520, 4294901760
  %v522 = vsub.f32 %v520, %v521
  %v523 = vand.u32 %v522, 4294901760
  %524 = vmatpush.msra.mxu0 %v523
  %v525 = vand.u32 %v50, 4294901760
  %v526 = vsub.f32 %v50, %v525
  %v527 = vand.u32 %v526, 4294901760
  %v528 = vsub.f32 %v526, %v527
  %v529 = vand.u32 %v528, 4294901760
  %530 = vmatpush.msra.mxu0 %v529
  %v531 = vand.u32 %v46, 4294901760
  %v532 = vsub.f32 %v46, %v531
  %v533 = vand.u32 %v532, 4294901760
  %v534 = vsub.f32 %v532, %v533
  %v535 = vand.u32 %v534, 4294901760
  %536 = vmatpush.msra.mxu0 %v535
  %v537 = vand.u32 %v42, 4294901760
  %v538 = vsub.f32 %v42, %v537
  %v539 = vand.u32 %v538, 4294901760
  %v540 = vsub.f32 %v538, %v539
  %v541 = vand.u32 %v540, 4294901760
  %542 = vmatpush.msra.mxu0 %v541
  %v543 = vand.u32 %v38, 4294901760
  %v544 = vsub.f32 %v38, %v543
  %v545 = vand.u32 %v544, 4294901760
  %v546 = vsub.f32 %v544, %v545
  %v547 = vand.u32 %v546, 4294901760
  %548 = vmatpush.msra.mxu0 %v547
  %v549 = vand.u32 %v34, 4294901760
  %v550 = vsub.f32 %v34, %v549
  %v551 = vand.u32 %v550, 4294901760
  %v552 = vsub.f32 %v550, %v551
  %v553 = vand.u32 %v552, 4294901760
  %554 = vmatpush.msra.mxu0 %v553
  %v555 = vand.u32 %v30, 4294901760
  %v556 = vsub.f32 %v30, %v555
  %v557 = vand.u32 %v556, 4294901760
  %v558 = vsub.f32 %v556, %v557
  %v559 = vand.u32 %v558, 4294901760
  %560 = vmatpush.msra.mxu0 %v559
  %v561 = vand.u32 %v26, 4294901760
  %v562 = vsub.f32 %v26, %v561
  %v563 = vand.u32 %v562, 4294901760
  %v564 = vsub.f32 %v562, %v563
  %v565 = vand.u32 %v564, 4294901760
  %566 = vmatpush.msra.mxu0 %v565
  %v567 = vand.u32 %v22, 4294901760
  %v568 = vsub.f32 %v22, %v567
  %v569 = vand.u32 %v568, 4294901760
  %v570 = vsub.f32 %v568, %v569
  %v571 = vand.u32 %v570, 4294901760
  %572 = vmatpush.msra.mxu0 %v571
  %v573 = vand.u32 %v20, 4294901760
  %574 = vmatmul.f32.gmra.mxu0 %v573
  %v575 = vpop.f32.mrf.mxu0
  %v576 = vadd.f32 %v475, %v575
  %577 = vdwg.mxu0
  %v578 = vand.u32 %v82, 4294901760
  %v579 = vsub.f32 %v82, %v578
  %580 = vmatpush.msra.mxu0 %v579
  %v581 = vand.u32 %v78, 4294901760
  %v582 = vsub.f32 %v78, %v581
  %583 = vmatpush.msra.mxu0 %v582
  %v584 = vand.u32 %v74, 4294901760
  %v585 = vsub.f32 %v74, %v584
  %586 = vmatpush.msra.mxu0 %v585
  %v587 = vand.u32 %v70, 4294901760
  %v588 = vsub.f32 %v70, %v587
  %589 = vmatpush.msra.mxu0 %v588
  %v590 = vand.u32 %v66, 4294901760
  %v591 = vsub.f32 %v66, %v590
  %592 = vmatpush.msra.mxu0 %v591
  %v593 = vand.u32 %v62, 4294901760
  %v594 = vsub.f32 %v62, %v593
  %595 = vmatpush.msra.mxu0 %v594
  %v596 = vand.u32 %v58, 4294901760
  %v597 = vsub.f32 %v58, %v596
  %598 = vmatpush.msra.mxu0 %v597
  %v599 = vand.u32 %v54, 4294901760
  %v600 = vsub.f32 %v54, %v599
  %601 = vmatpush.msra.mxu0 %v600
  %v602 = vand.u32 %v50, 4294901760
  %v603 = vsub.f32 %v50, %v602
  %604 = vmatpush.msra.mxu0 %v603
  %v605 = vand.u32 %v46, 4294901760
  %v606 = vsub.f32 %v46, %v605
  %607 = vmatpush.msra.mxu0 %v606
  %v608 = vand.u32 %v42, 4294901760
  %v609 = vsub.f32 %v42, %v608
  %610 = vmatpush.msra.mxu0 %v609
  %v611 = vand.u32 %v38, 4294901760
  %v612 = vsub.f32 %v38, %v611
  %613 = vmatpush.msra.mxu0 %v612
  %v614 = vand.u32 %v34, 4294901760
  %v615 = vsub.f32 %v34, %v614
  %616 = vmatpush.msra.mxu0 %v615
  %v617 = vand.u32 %v30, 4294901760
  %v618 = vsub.f32 %v30, %v617
  %619 = vmatpush.msra.mxu0 %v618
  %v620 = vand.u32 %v26, 4294901760
  %v621 = vsub.f32 %v26, %v620
  %622 = vmatpush.msra.mxu0 %v621
  %v623 = vand.u32 %v22, 4294901760
  %v624 = vsub.f32 %v22, %v623
  %625 = vmatpush.msra.mxu0 %v624
  %v626 = vand.u32 %v20, 4294901760
  %v627 = vsub.f32 %v20, %v626
  %628 = vmatmul.f32.gmra.mxu0 %v627
  %v629 = vpop.f32.mrf.mxu0
  %v630 = vadd.f32 %v576, %v629
  %631 = vdwg.mxu0
  %v632 = vand.u32 %v82, 4294901760
  %633 = vmatpush.msra.mxu0 %v632
  %v634 = vand.u32 %v78, 4294901760
  %635 = vmatpush.msra.mxu0 %v634
  %v636 = vand.u32 %v74, 4294901760
  %637 = vmatpush.msra.mxu0 %v636
  %v638 = vand.u32 %v70, 4294901760
  %639 = vmatpush.msra.mxu0 %v638
  %v640 = vand.u32 %v66, 4294901760
  %641 = vmatpush.msra.mxu0 %v640
  %v642 = vand.u32 %v62, 4294901760
  %643 = vmatpush.msra.mxu0 %v642
  %v644 = vand.u32 %v58, 4294901760
  %645 = vmatpush.msra.mxu0 %v644
  %v646 = vand.u32 %v54, 4294901760
  %647 = vmatpush.msra.mxu0 %v646
  %v648 = vand.u32 %v50, 4294901760
  %649 = vmatpush.msra.mxu0 %v648
  %v650 = vand.u32 %v46, 4294901760
  %651 = vmatpush.msra.mxu0 %v650
  %v652 = vand.u32 %v42, 4294901760
  %653 = vmatpush.msra.mxu0 %v652
  %v654 = vand.u32 %v38, 4294901760
  %655 = vmatpush.msra.mxu0 %v654
  %v656 = vand.u32 %v34, 4294901760
  %657 = vmatpush.msra.mxu0 %v656
  %v658 = vand.u32 %v30, 4294901760
  %659 = vmatpush.msra.mxu0 %v658
  %v660 = vand.u32 %v26, 4294901760
  %661 = vmatpush.msra.mxu0 %v660
  %v662 = vand.u32 %v22, 4294901760
  %663 = vmatpush.msra.mxu0 %v662
  %v664 = vand.u32 %v20, 4294901760
  %v665 = vsub.f32 %v20, %v664
  %v666 = vand.u32 %v665, 4294901760
  %667 = vmatmul.f32.gmra.mxu0 %v666
  %v668 = vpop.f32.mrf.mxu0
  %v669 = vadd.f32 %v630, %v668
  %670 = vdwg.mxu0
  %v671 = vand.u32 %v82, 4294901760
  %v672 = vsub.f32 %v82, %v671
  %v673 = vand.u32 %v672, 4294901760
  %674 = vmatpush.msra.mxu0 %v673
  %v675 = vand.u32 %v78, 4294901760
  %v676 = vsub.f32 %v78, %v675
  %v677 = vand.u32 %v676, 4294901760
  %678 = vmatpush.msra.mxu0 %v677
  %v679 = vand.u32 %v74, 4294901760
  %v680 = vsub.f32 %v74, %v679
  %v681 = vand.u32 %v680, 4294901760
  %682 = vmatpush.msra.mxu0 %v681
  %v683 = vand.u32 %v70, 4294901760
  %v684 = vsub.f32 %v70, %v683
  %v685 = vand.u32 %v684, 4294901760
  %686 = vmatpush.msra.mxu0 %v685
  %v687 = vand.u32 %v66, 4294901760
  %v688 = vsub.f32 %v66, %v687
  %v689 = vand.u32 %v688, 4294901760
  %690 = vmatpush.msra.mxu0 %v689
  %v691 = vand.u32 %v62, 4294901760
  %v692 = vsub.f32 %v62, %v691
  %v693 = vand.u32 %v692, 4294901760
  %694 = vmatpush.msra.mxu0 %v693
  %v695 = vand.u32 %v58, 4294901760
  %v696 = vsub.f32 %v58, %v695
  %v697 = vand.u32 %v696, 4294901760
  %698 = vmatpush.msra.mxu0 %v697
  %v699 = vand.u32 %v54, 4294901760
  %v700 = vsub.f32 %v54, %v699
  %v701 = vand.u32 %v700, 4294901760
  %702 = vmatpush.msra.mxu0 %v701
  %v703 = vand.u32 %v50, 4294901760
  %v704 = vsub.f32 %v50, %v703
  %v705 = vand.u32 %v704, 4294901760
  %706 = vmatpush.msra.mxu0 %v705
  %v707 = vand.u32 %v46, 4294901760
  %v708 = vsub.f32 %v46, %v707
  %v709 = vand.u32 %v708, 4294901760
  %710 = vmatpush.msra.mxu0 %v709
  %v711 = vand.u32 %v42, 4294901760
  %v712 = vsub.f32 %v42, %v711
  %v713 = vand.u32 %v712, 4294901760
  %714 = vmatpush.msra.mxu0 %v713
  %v715 = vand.u32 %v38, 4294901760
  %v716 = vsub.f32 %v38, %v715
  %v717 = vand.u32 %v716, 4294901760
  %718 = vmatpush.msra.mxu0 %v717
  %v719 = vand.u32 %v34, 4294901760
  %v720 = vsub.f32 %v34, %v719
  %v721 = vand.u32 %v720, 4294901760
  %722 = vmatpush.msra.mxu0 %v721
  %v723 = vand.u32 %v30, 4294901760
  %v724 = vsub.f32 %v30, %v723
  %v725 = vand.u32 %v724, 4294901760
  %726 = vmatpush.msra.mxu0 %v725
  %v727 = vand.u32 %v26, 4294901760
  %v728 = vsub.f32 %v26, %v727
  %v729 = vand.u32 %v728, 4294901760
  %730 = vmatpush.msra.mxu0 %v729
  %v731 = vand.u32 %v22, 4294901760
  %v732 = vsub.f32 %v22, %v731
  %v733 = vand.u32 %v732, 4294901760
  %734 = vmatpush.msra.mxu0 %v733
  %v735 = vand.u32 %v20, 4294901760
  %736 = vmatmul.f32.gmra.mxu0 %v735
  %v737 = vpop.f32.mrf.mxu0
  %v738 = vadd.f32 %v669, %v737
  %739 = vdwg.mxu0
  %v740 = vand.u32 %v82, 4294901760
  %741 = vmatpush.msra.mxu0 %v740
  %v742 = vand.u32 %v78, 4294901760
  %743 = vmatpush.msra.mxu0 %v742
  %v744 = vand.u32 %v74, 4294901760
  %745 = vmatpush.msra.mxu0 %v744
  %v746 = vand.u32 %v70, 4294901760
  %747 = vmatpush.msra.mxu0 %v746
  %v748 = vand.u32 %v66, 4294901760
  %749 = vmatpush.msra.mxu0 %v748
  %v750 = vand.u32 %v62, 4294901760
  %751 = vmatpush.msra.mxu0 %v750
  %v752 = vand.u32 %v58, 4294901760
  %753 = vmatpush.msra.mxu0 %v752
  %v754 = vand.u32 %v54, 4294901760
  %755 = vmatpush.msra.mxu0 %v754
  %v756 = vand.u32 %v50, 4294901760
  %757 = vmatpush.msra.mxu0 %v756
  %v758 = vand.u32 %v46, 4294901760
  %759 = vmatpush.msra.mxu0 %v758
  %v760 = vand.u32 %v42, 4294901760
  %761 = vmatpush.msra.mxu0 %v760
  %v762 = vand.u32 %v38, 4294901760
  %763 = vmatpush.msra.mxu0 %v762
  %v764 = vand.u32 %v34, 4294901760
  %765 = vmatpush.msra.mxu0 %v764
  %v766 = vand.u32 %v30, 4294901760
  %767 = vmatpush.msra.mxu0 %v766
  %v768 = vand.u32 %v26, 4294901760
  %769 = vmatpush.msra.mxu0 %v768
  %v770 = vand.u32 %v22, 4294901760
  %771 = vmatpush.msra.mxu0 %v770
  %v772 = vand.u32 %v20, 4294901760
  %773 = vmatmul.f32.gmra.mxu0 %v772
  %v774 = vpop.f32.mrf.mxu0
  %v775 = vadd.f32 %v738, %v774
  %776 = vdwg.mxu0
  %v777 = vand.u32 %v83, 4294901760
  %778 = vmatpush.msra.mxu0 %v777
  %v779 = vand.u32 %v79, 4294901760
  %780 = vmatpush.msra.mxu0 %v779
  %v781 = vand.u32 %v75, 4294901760
  %782 = vmatpush.msra.mxu0 %v781
  %v783 = vand.u32 %v71, 4294901760
  %784 = vmatpush.msra.mxu0 %v783
  %v785 = vand.u32 %v67, 4294901760
  %786 = vmatpush.msra.mxu0 %v785
  %v787 = vand.u32 %v63, 4294901760
  %788 = vmatpush.msra.mxu0 %v787
  %v789 = vand.u32 %v59, 4294901760
  %790 = vmatpush.msra.mxu0 %v789
  %v791 = vand.u32 %v55, 4294901760
  %792 = vmatpush.msra.mxu0 %v791
  %v793 = vand.u32 %v51, 4294901760
  %794 = vmatpush.msra.mxu0 %v793
  %v795 = vand.u32 %v47, 4294901760
  %796 = vmatpush.msra.mxu0 %v795
  %v797 = vand.u32 %v43, 4294901760
  %798 = vmatpush.msra.mxu0 %v797
  %v799 = vand.u32 %v39, 4294901760
  %800 = vmatpush.msra.mxu0 %v799
  %v801 = vand.u32 %v35, 4294901760
  %802 = vmatpush.msra.mxu0 %v801
  %v803 = vand.u32 %v31, 4294901760
  %804 = vmatpush.msra.mxu0 %v803
  %v805 = vand.u32 %v27, 4294901760
  %806 = vmatpush.msra.mxu0 %v805
  %v807 = vand.u32 %v23, 4294901760
  %808 = vmatpush.msra.mxu0 %v807
  %v809 = vand.u32 %v20, 4294901760
  %v810 = vsub.f32 %v20, %v809
  %v811 = vand.u32 %v810, 4294901760
  %v812 = vsub.f32 %v810, %v811
  %v813 = vand.u32 %v812, 4294901760
  %814 = vmatmul.f32.gmra.mxu0 %v813
  %v815 = vpop.f32.mrf.mxu0
  %v816 = vadd.f32 %v89, %v815
  %817 = vdwg.mxu0
  %v818 = vand.u32 %v83, 4294901760
  %v819 = vsub.f32 %v83, %v818
  %v820 = vand.u32 %v819, 4294901760
  %v821 = vsub.f32 %v819, %v820
  %v822 = vand.u32 %v821, 4294901760
  %823 = vmatpush.msra.mxu0 %v822
  %v824 = vand.u32 %v79, 4294901760
  %v825 = vsub.f32 %v79, %v824
  %v826 = vand.u32 %v825, 4294901760
  %v827 = vsub.f32 %v825, %v826
  %v828 = vand.u32 %v827, 4294901760
  %829 = vmatpush.msra.mxu0 %v828
  %v830 = vand.u32 %v75, 4294901760
  %v831 = vsub.f32 %v75, %v830
  %v832 = vand.u32 %v831, 4294901760
  %v833 = vsub.f32 %v831, %v832
  %v834 = vand.u32 %v833, 4294901760
  %835 = vmatpush.msra.mxu0 %v834
  %v836 = vand.u32 %v71, 4294901760
  %v837 = vsub.f32 %v71, %v836
  %v838 = vand.u32 %v837, 4294901760
  %v839 = vsub.f32 %v837, %v838
  %v840 = vand.u32 %v839, 4294901760
  %841 = vmatpush.msra.mxu0 %v840
  %v842 = vand.u32 %v67, 4294901760
  %v843 = vsub.f32 %v67, %v842
  %v844 = vand.u32 %v843, 4294901760
  %v845 = vsub.f32 %v843, %v844
  %v846 = vand.u32 %v845, 4294901760
  %847 = vmatpush.msra.mxu0 %v846
  %v848 = vand.u32 %v63, 4294901760
  %v849 = vsub.f32 %v63, %v848
  %v850 = vand.u32 %v849, 4294901760
  %v851 = vsub.f32 %v849, %v850
  %v852 = vand.u32 %v851, 4294901760
  %853 = vmatpush.msra.mxu0 %v852
  %v854 = vand.u32 %v59, 4294901760
  %v855 = vsub.f32 %v59, %v854
  %v856 = vand.u32 %v855, 4294901760
  %v857 = vsub.f32 %v855, %v856
  %v858 = vand.u32 %v857, 4294901760
  %859 = vmatpush.msra.mxu0 %v858
  %v860 = vand.u32 %v55, 4294901760
  %v861 = vsub.f32 %v55, %v860
  %v862 = vand.u32 %v861, 4294901760
  %v863 = vsub.f32 %v861, %v862
  %v864 = vand.u32 %v863, 4294901760
  %865 = vmatpush.msra.mxu0 %v864
  %v866 = vand.u32 %v51, 4294901760
  %v867 = vsub.f32 %v51, %v866
  %v868 = vand.u32 %v867, 4294901760
  %v869 = vsub.f32 %v867, %v868
  %v870 = vand.u32 %v869, 4294901760
  %871 = vmatpush.msra.mxu0 %v870
  %v872 = vand.u32 %v47, 4294901760
  %v873 = vsub.f32 %v47, %v872
  %v874 = vand.u32 %v873, 4294901760
  %v875 = vsub.f32 %v873, %v874
  %v876 = vand.u32 %v875, 4294901760
  %877 = vmatpush.msra.mxu0 %v876
  %v878 = vand.u32 %v43, 4294901760
  %v879 = vsub.f32 %v43, %v878
  %v880 = vand.u32 %v879, 4294901760
  %v881 = vsub.f32 %v879, %v880
  %v882 = vand.u32 %v881, 4294901760
  %883 = vmatpush.msra.mxu0 %v882
  %v884 = vand.u32 %v39, 4294901760
  %v885 = vsub.f32 %v39, %v884
  %v886 = vand.u32 %v885, 4294901760
  %v887 = vsub.f32 %v885, %v886
  %v888 = vand.u32 %v887, 4294901760
  %889 = vmatpush.msra.mxu0 %v888
  %v890 = vand.u32 %v35, 4294901760
  %v891 = vsub.f32 %v35, %v890
  %v892 = vand.u32 %v891, 4294901760
  %v893 = vsub.f32 %v891, %v892
  %v894 = vand.u32 %v893, 4294901760
  %895 = vmatpush.msra.mxu0 %v894
  %v896 = vand.u32 %v31, 4294901760
  %v897 = vsub.f32 %v31, %v896
  %v898 = vand.u32 %v897, 4294901760
  %v899 = vsub.f32 %v897, %v898
  %v900 = vand.u32 %v899, 4294901760
  %901 = vmatpush.msra.mxu0 %v900
  %v902 = vand.u32 %v27, 4294901760
  %v903 = vsub.f32 %v27, %v902
  %v904 = vand.u32 %v903, 4294901760
  %v905 = vsub.f32 %v903, %v904
  %v906 = vand.u32 %v905, 4294901760
  %907 = vmatpush.msra.mxu0 %v906
  %v908 = vand.u32 %v23, 4294901760
  %v909 = vsub.f32 %v23, %v908
  %v910 = vand.u32 %v909, 4294901760
  %v911 = vsub.f32 %v909, %v910
  %v912 = vand.u32 %v911, 4294901760
  %913 = vmatpush.msra.mxu0 %v912
  %v914 = vand.u32 %v20, 4294901760
  %915 = vmatmul.f32.gmra.mxu0 %v914
  %v916 = vpop.f32.mrf.mxu0
  %v917 = vadd.f32 %v816, %v916
  %918 = vdwg.mxu0
  %v919 = vand.u32 %v83, 4294901760
  %v920 = vsub.f32 %v83, %v919
  %921 = vmatpush.msra.mxu0 %v920
  %v922 = vand.u32 %v79, 4294901760
  %v923 = vsub.f32 %v79, %v922
  %924 = vmatpush.msra.mxu0 %v923
  %v925 = vand.u32 %v75, 4294901760
  %v926 = vsub.f32 %v75, %v925
  %927 = vmatpush.msra.mxu0 %v926
  %v928 = vand.u32 %v71, 4294901760
  %v929 = vsub.f32 %v71, %v928
  %930 = vmatpush.msra.mxu0 %v929
  %v931 = vand.u32 %v67, 4294901760
  %v932 = vsub.f32 %v67, %v931
  %933 = vmatpush.msra.mxu0 %v932
  %v934 = vand.u32 %v63, 4294901760
  %v935 = vsub.f32 %v63, %v934
  %936 = vmatpush.msra.mxu0 %v935
  %v937 = vand.u32 %v59, 4294901760
  %v938 = vsub.f32 %v59, %v937
  %939 = vmatpush.msra.mxu0 %v938
  %v940 = vand.u32 %v55, 4294901760
  %v941 = vsub.f32 %v55, %v940
  %942 = vmatpush.msra.mxu0 %v941
  %v943 = vand.u32 %v51, 4294901760
  %v944 = vsub.f32 %v51, %v943
  %945 = vmatpush.msra.mxu0 %v944
  %v946 = vand.u32 %v47, 4294901760
  %v947 = vsub.f32 %v47, %v946
  %948 = vmatpush.msra.mxu0 %v947
  %v949 = vand.u32 %v43, 4294901760
  %v950 = vsub.f32 %v43, %v949
  %951 = vmatpush.msra.mxu0 %v950
  %v952 = vand.u32 %v39, 4294901760
  %v953 = vsub.f32 %v39, %v952
  %954 = vmatpush.msra.mxu0 %v953
  %v955 = vand.u32 %v35, 4294901760
  %v956 = vsub.f32 %v35, %v955
  %957 = vmatpush.msra.mxu0 %v956
  %v958 = vand.u32 %v31, 4294901760
  %v959 = vsub.f32 %v31, %v958
  %960 = vmatpush.msra.mxu0 %v959
  %v961 = vand.u32 %v27, 4294901760
  %v962 = vsub.f32 %v27, %v961
  %963 = vmatpush.msra.mxu0 %v962
  %v964 = vand.u32 %v23, 4294901760
  %v965 = vsub.f32 %v23, %v964
  %966 = vmatpush.msra.mxu0 %v965
  %v967 = vand.u32 %v20, 4294901760
  %v968 = vsub.f32 %v20, %v967
  %969 = vmatmul.f32.gmra.mxu0 %v968
  %v970 = vpop.f32.mrf.mxu0
  %v971 = vadd.f32 %v917, %v970
  %972 = vdwg.mxu0
  %v973 = vand.u32 %v83, 4294901760
  %974 = vmatpush.msra.mxu0 %v973
  %v975 = vand.u32 %v79, 4294901760
  %976 = vmatpush.msra.mxu0 %v975
  %v977 = vand.u32 %v75, 4294901760
  %978 = vmatpush.msra.mxu0 %v977
  %v979 = vand.u32 %v71, 4294901760
  %980 = vmatpush.msra.mxu0 %v979
  %v981 = vand.u32 %v67, 4294901760
  %982 = vmatpush.msra.mxu0 %v981
  %v983 = vand.u32 %v63, 4294901760
  %984 = vmatpush.msra.mxu0 %v983
  %v985 = vand.u32 %v59, 4294901760
  %986 = vmatpush.msra.mxu0 %v985
  %v987 = vand.u32 %v55, 4294901760
  %988 = vmatpush.msra.mxu0 %v987
  %v989 = vand.u32 %v51, 4294901760
  %990 = vmatpush.msra.mxu0 %v989
  %v991 = vand.u32 %v47, 4294901760
  %992 = vmatpush.msra.mxu0 %v991
  %v993 = vand.u32 %v43, 4294901760
  %994 = vmatpush.msra.mxu0 %v993
  %v995 = vand.u32 %v39, 4294901760
  %996 = vmatpush.msra.mxu0 %v995
  %v997 = vand.u32 %v35, 4294901760
  %998 = vmatpush.msra.mxu0 %v997
  %v999 = vand.u32 %v31, 4294901760
  %1000 = vmatpush.msra.mxu0 %v999
  %v1001 = vand.u32 %v27, 4294901760
  %1002 = vmatpush.msra.mxu0 %v1001
  %v1003 = vand.u32 %v23, 4294901760
  %1004 = vmatpush.msra.mxu0 %v1003
  %v1005 = vand.u32 %v20, 4294901760
  %v1006 = vsub.f32 %v20, %v1005
  %v1007 = vand.u32 %v1006, 4294901760
  %1008 = vmatmul.f32.gmra.mxu0 %v1007
  %v1009 = vpop.f32.mrf.mxu0
  %v1010 = vadd.f32 %v971, %v1009
  %1011 = vdwg.mxu0
  %v1012 = vand.u32 %v83, 4294901760
  %v1013 = vsub.f32 %v83, %v1012
  %v1014 = vand.u32 %v1013, 4294901760
  %1015 = vmatpush.msra.mxu0 %v1014
  %v1016 = vand.u32 %v79, 4294901760
  %v1017 = vsub.f32 %v79, %v1016
  %v1018 = vand.u32 %v1017, 4294901760
  %1019 = vmatpush.msra.mxu0 %v1018
  %v1020 = vand.u32 %v75, 4294901760
  %v1021 = vsub.f32 %v75, %v1020
  %v1022 = vand.u32 %v1021, 4294901760
  %1023 = vmatpush.msra.mxu0 %v1022
  %v1024 = vand.u32 %v71, 4294901760
  %v1025 = vsub.f32 %v71, %v1024
  %v1026 = vand.u32 %v1025, 4294901760
  %1027 = vmatpush.msra.mxu0 %v1026
  %v1028 = vand.u32 %v67, 4294901760
  %v1029 = vsub.f32 %v67, %v1028
  %v1030 = vand.u32 %v1029, 4294901760
  %1031 = vmatpush.msra.mxu0 %v1030
  %v1032 = vand.u32 %v63, 4294901760
  %v1033 = vsub.f32 %v63, %v1032
  %v1034 = vand.u32 %v1033, 4294901760
  %1035 = vmatpush.msra.mxu0 %v1034
  %v1036 = vand.u32 %v59, 4294901760
  %v1037 = vsub.f32 %v59, %v1036
  %v1038 = vand.u32 %v1037, 4294901760
  %1039 = vmatpush.msra.mxu0 %v1038
  %v1040 = vand.u32 %v55, 4294901760
  %v1041 = vsub.f32 %v55, %v1040
  %v1042 = vand.u32 %v1041, 4294901760
  %1043 = vmatpush.msra.mxu0 %v1042
  %v1044 = vand.u32 %v51, 4294901760
  %v1045 = vsub.f32 %v51, %v1044
  %v1046 = vand.u32 %v1045, 4294901760
  %1047 = vmatpush.msra.mxu0 %v1046
  %v1048 = vand.u32 %v47, 4294901760
  %v1049 = vsub.f32 %v47, %v1048
  %v1050 = vand.u32 %v1049, 4294901760
  %1051 = vmatpush.msra.mxu0 %v1050
  %v1052 = vand.u32 %v43, 4294901760
  %v1053 = vsub.f32 %v43, %v1052
  %v1054 = vand.u32 %v1053, 4294901760
  %1055 = vmatpush.msra.mxu0 %v1054
  %v1056 = vand.u32 %v39, 4294901760
  %v1057 = vsub.f32 %v39, %v1056
  %v1058 = vand.u32 %v1057, 4294901760
  %1059 = vmatpush.msra.mxu0 %v1058
  %v1060 = vand.u32 %v35, 4294901760
  %v1061 = vsub.f32 %v35, %v1060
  %v1062 = vand.u32 %v1061, 4294901760
  %1063 = vmatpush.msra.mxu0 %v1062
  %v1064 = vand.u32 %v31, 4294901760
  %v1065 = vsub.f32 %v31, %v1064
  %v1066 = vand.u32 %v1065, 4294901760
  %1067 = vmatpush.msra.mxu0 %v1066
  %v1068 = vand.u32 %v27, 4294901760
  %v1069 = vsub.f32 %v27, %v1068
  %v1070 = vand.u32 %v1069, 4294901760
  %1071 = vmatpush.msra.mxu0 %v1070
  %v1072 = vand.u32 %v23, 4294901760
  %v1073 = vsub.f32 %v23, %v1072
  %v1074 = vand.u32 %v1073, 4294901760
  %1075 = vmatpush.msra.mxu0 %v1074
  %v1076 = vand.u32 %v20, 4294901760
  %1077 = vmatmul.f32.gmra.mxu0 %v1076
  %v1078 = vpop.f32.mrf.mxu0
  %v1079 = vadd.f32 %v1010, %v1078
  %1080 = vdwg.mxu0
  %v1081 = vand.u32 %v83, 4294901760
  %1082 = vmatpush.msra.mxu0 %v1081
  %v1083 = vand.u32 %v79, 4294901760
  %1084 = vmatpush.msra.mxu0 %v1083
  %v1085 = vand.u32 %v75, 4294901760
  %1086 = vmatpush.msra.mxu0 %v1085
  %v1087 = vand.u32 %v71, 4294901760
  %1088 = vmatpush.msra.mxu0 %v1087
  %v1089 = vand.u32 %v67, 4294901760
  %1090 = vmatpush.msra.mxu0 %v1089
  %v1091 = vand.u32 %v63, 4294901760
  %1092 = vmatpush.msra.mxu0 %v1091
  %v1093 = vand.u32 %v59, 4294901760
  %1094 = vmatpush.msra.mxu0 %v1093
  %v1095 = vand.u32 %v55, 4294901760
  %1096 = vmatpush.msra.mxu0 %v1095
  %v1097 = vand.u32 %v51, 4294901760
  %1098 = vmatpush.msra.mxu0 %v1097
  %v1099 = vand.u32 %v47, 4294901760
  %1100 = vmatpush.msra.mxu0 %v1099
  %v1101 = vand.u32 %v43, 4294901760
  %1102 = vmatpush.msra.mxu0 %v1101
  %v1103 = vand.u32 %v39, 4294901760
  %1104 = vmatpush.msra.mxu0 %v1103
  %v1105 = vand.u32 %v35, 4294901760
  %1106 = vmatpush.msra.mxu0 %v1105
  %v1107 = vand.u32 %v31, 4294901760
  %1108 = vmatpush.msra.mxu0 %v1107
  %v1109 = vand.u32 %v27, 4294901760
  %1110 = vmatpush.msra.mxu0 %v1109
  %v1111 = vand.u32 %v23, 4294901760
  %1112 = vmatpush.msra.mxu0 %v1111
  %v1113 = vand.u32 %v20, 4294901760
  %1114 = vmatmul.f32.gmra.mxu0 %v1113
  %v1115 = vpop.f32.mrf.mxu0
  %v1116 = vadd.f32 %v1079, %v1115
  %1117 = vdwg.mxu0
  %v1118 = vand.u32 %v84, 4294901760
  %1119 = vmatpush.msra.mxu0 %v1118
  %v1120 = vand.u32 %v80, 4294901760
  %1121 = vmatpush.msra.mxu0 %v1120
  %v1122 = vand.u32 %v76, 4294901760
  %1123 = vmatpush.msra.mxu0 %v1122
  %v1124 = vand.u32 %v72, 4294901760
  %1125 = vmatpush.msra.mxu0 %v1124
  %v1126 = vand.u32 %v68, 4294901760
  %1127 = vmatpush.msra.mxu0 %v1126
  %v1128 = vand.u32 %v64, 4294901760
  %1129 = vmatpush.msra.mxu0 %v1128
  %v1130 = vand.u32 %v60, 4294901760
  %1131 = vmatpush.msra.mxu0 %v1130
  %v1132 = vand.u32 %v56, 4294901760
  %1133 = vmatpush.msra.mxu0 %v1132
  %v1134 = vand.u32 %v52, 4294901760
  %1135 = vmatpush.msra.mxu0 %v1134
  %v1136 = vand.u32 %v48, 4294901760
  %1137 = vmatpush.msra.mxu0 %v1136
  %v1138 = vand.u32 %v44, 4294901760
  %1139 = vmatpush.msra.mxu0 %v1138
  %v1140 = vand.u32 %v40, 4294901760
  %1141 = vmatpush.msra.mxu0 %v1140
  %v1142 = vand.u32 %v36, 4294901760
  %1143 = vmatpush.msra.mxu0 %v1142
  %v1144 = vand.u32 %v32, 4294901760
  %1145 = vmatpush.msra.mxu0 %v1144
  %v1146 = vand.u32 %v28, 4294901760
  %1147 = vmatpush.msra.mxu0 %v1146
  %v1148 = vand.u32 %v24, 4294901760
  %1149 = vmatpush.msra.mxu0 %v1148
  %v1150 = vand.u32 %v20, 4294901760
  %v1151 = vsub.f32 %v20, %v1150
  %v1152 = vand.u32 %v1151, 4294901760
  %v1153 = vsub.f32 %v1151, %v1152
  %v1154 = vand.u32 %v1153, 4294901760
  %1155 = vmatmul.f32.gmra.mxu0 %v1154
  %v1156 = vpop.f32.mrf.mxu0
  %v1157 = vadd.f32 %v90, %v1156
  %1158 = vdwg.mxu0
  %v1159 = vand.u32 %v84, 4294901760
  %v1160 = vsub.f32 %v84, %v1159
  %v1161 = vand.u32 %v1160, 4294901760
  %v1162 = vsub.f32 %v1160, %v1161
  %v1163 = vand.u32 %v1162, 4294901760
  %1164 = vmatpush.msra.mxu0 %v1163
  %v1165 = vand.u32 %v80, 4294901760
  %v1166 = vsub.f32 %v80, %v1165
  %v1167 = vand.u32 %v1166, 4294901760
  %v1168 = vsub.f32 %v1166, %v1167
  %v1169 = vand.u32 %v1168, 4294901760
  %1170 = vmatpush.msra.mxu0 %v1169
  %v1171 = vand.u32 %v76, 4294901760
  %v1172 = vsub.f32 %v76, %v1171
  %v1173 = vand.u32 %v1172, 4294901760
  %v1174 = vsub.f32 %v1172, %v1173
  %v1175 = vand.u32 %v1174, 4294901760
  %1176 = vmatpush.msra.mxu0 %v1175
  %v1177 = vand.u32 %v72, 4294901760
  %v1178 = vsub.f32 %v72, %v1177
  %v1179 = vand.u32 %v1178, 4294901760
  %v1180 = vsub.f32 %v1178, %v1179
  %v1181 = vand.u32 %v1180, 4294901760
  %1182 = vmatpush.msra.mxu0 %v1181
  %v1183 = vand.u32 %v68, 4294901760
  %v1184 = vsub.f32 %v68, %v1183
  %v1185 = vand.u32 %v1184, 4294901760
  %v1186 = vsub.f32 %v1184, %v1185
  %v1187 = vand.u32 %v1186, 4294901760
  %1188 = vmatpush.msra.mxu0 %v1187
  %v1189 = vand.u32 %v64, 4294901760
  %v1190 = vsub.f32 %v64, %v1189
  %v1191 = vand.u32 %v1190, 4294901760
  %v1192 = vsub.f32 %v1190, %v1191
  %v1193 = vand.u32 %v1192, 4294901760
  %1194 = vmatpush.msra.mxu0 %v1193
  %v1195 = vand.u32 %v60, 4294901760
  %v1196 = vsub.f32 %v60, %v1195
  %v1197 = vand.u32 %v1196, 4294901760
  %v1198 = vsub.f32 %v1196, %v1197
  %v1199 = vand.u32 %v1198, 4294901760
  %1200 = vmatpush.msra.mxu0 %v1199
  %v1201 = vand.u32 %v56, 4294901760
  %v1202 = vsub.f32 %v56, %v1201
  %v1203 = vand.u32 %v1202, 4294901760
  %v1204 = vsub.f32 %v1202, %v1203
  %v1205 = vand.u32 %v1204, 4294901760
  %1206 = vmatpush.msra.mxu0 %v1205
  %v1207 = vand.u32 %v52, 4294901760
  %v1208 = vsub.f32 %v52, %v1207
  %v1209 = vand.u32 %v1208, 4294901760
  %v1210 = vsub.f32 %v1208, %v1209
  %v1211 = vand.u32 %v1210, 4294901760
  %1212 = vmatpush.msra.mxu0 %v1211
  %v1213 = vand.u32 %v48, 4294901760
  %v1214 = vsub.f32 %v48, %v1213
  %v1215 = vand.u32 %v1214, 4294901760
  %v1216 = vsub.f32 %v1214, %v1215
  %v1217 = vand.u32 %v1216, 4294901760
  %1218 = vmatpush.msra.mxu0 %v1217
  %v1219 = vand.u32 %v44, 4294901760
  %v1220 = vsub.f32 %v44, %v1219
  %v1221 = vand.u32 %v1220, 4294901760
  %v1222 = vsub.f32 %v1220, %v1221
  %v1223 = vand.u32 %v1222, 4294901760
  %1224 = vmatpush.msra.mxu0 %v1223
  %v1225 = vand.u32 %v40, 4294901760
  %v1226 = vsub.f32 %v40, %v1225
  %v1227 = vand.u32 %v1226, 4294901760
  %v1228 = vsub.f32 %v1226, %v1227
  %v1229 = vand.u32 %v1228, 4294901760
  %1230 = vmatpush.msra.mxu0 %v1229
  %v1231 = vand.u32 %v36, 4294901760
  %v1232 = vsub.f32 %v36, %v1231
  %v1233 = vand.u32 %v1232, 4294901760
  %v1234 = vsub.f32 %v1232, %v1233
  %v1235 = vand.u32 %v1234, 4294901760
  %1236 = vmatpush.msra.mxu0 %v1235
  %v1237 = vand.u32 %v32, 4294901760
  %v1238 = vsub.f32 %v32, %v1237
  %v1239 = vand.u32 %v1238, 4294901760
  %v1240 = vsub.f32 %v1238, %v1239
  %v1241 = vand.u32 %v1240, 4294901760
  %1242 = vmatpush.msra.mxu0 %v1241
  %v1243 = vand.u32 %v28, 4294901760
  %v1244 = vsub.f32 %v28, %v1243
  %v1245 = vand.u32 %v1244, 4294901760
  %v1246 = vsub.f32 %v1244, %v1245
  %v1247 = vand.u32 %v1246, 4294901760
  %1248 = vmatpush.msra.mxu0 %v1247
  %v1249 = vand.u32 %v24, 4294901760
  %v1250 = vsub.f32 %v24, %v1249
  %v1251 = vand.u32 %v1250, 4294901760
  %v1252 = vsub.f32 %v1250, %v1251
  %v1253 = vand.u32 %v1252, 4294901760
  %1254 = vmatpush.msra.mxu0 %v1253
  %v1255 = vand.u32 %v20, 4294901760
  %1256 = vmatmul.f32.gmra.mxu0 %v1255
  %v1257 = vpop.f32.mrf.mxu0
  %v1258 = vadd.f32 %v1157, %v1257
  %1259 = vdwg.mxu0
  %v1260 = vand.u32 %v84, 4294901760
  %v1261 = vsub.f32 %v84, %v1260
  %1262 = vmatpush.msra.mxu0 %v1261
  %v1263 = vand.u32 %v80, 4294901760
  %v1264 = vsub.f32 %v80, %v1263
  %1265 = vmatpush.msra.mxu0 %v1264
  %v1266 = vand.u32 %v76, 4294901760
  %v1267 = vsub.f32 %v76, %v1266
  %1268 = vmatpush.msra.mxu0 %v1267
  %v1269 = vand.u32 %v72, 4294901760
  %v1270 = vsub.f32 %v72, %v1269
  %1271 = vmatpush.msra.mxu0 %v1270
  %v1272 = vand.u32 %v68, 4294901760
  %v1273 = vsub.f32 %v68, %v1272
  %1274 = vmatpush.msra.mxu0 %v1273
  %v1275 = vand.u32 %v64, 4294901760
  %v1276 = vsub.f32 %v64, %v1275
  %1277 = vmatpush.msra.mxu0 %v1276
  %v1278 = vand.u32 %v60, 4294901760
  %v1279 = vsub.f32 %v60, %v1278
  %1280 = vmatpush.msra.mxu0 %v1279
  %v1281 = vand.u32 %v56, 4294901760
  %v1282 = vsub.f32 %v56, %v1281
  %1283 = vmatpush.msra.mxu0 %v1282
  %v1284 = vand.u32 %v52, 4294901760
  %v1285 = vsub.f32 %v52, %v1284
  %1286 = vmatpush.msra.mxu0 %v1285
  %v1287 = vand.u32 %v48, 4294901760
  %v1288 = vsub.f32 %v48, %v1287
  %1289 = vmatpush.msra.mxu0 %v1288
  %v1290 = vand.u32 %v44, 4294901760
  %v1291 = vsub.f32 %v44, %v1290
  %1292 = vmatpush.msra.mxu0 %v1291
  %v1293 = vand.u32 %v40, 4294901760
  %v1294 = vsub.f32 %v40, %v1293
  %1295 = vmatpush.msra.mxu0 %v1294
  %v1296 = vand.u32 %v36, 4294901760
  %v1297 = vsub.f32 %v36, %v1296
  %1298 = vmatpush.msra.mxu0 %v1297
  %v1299 = vand.u32 %v32, 4294901760
  %v1300 = vsub.f32 %v32, %v1299
  %1301 = vmatpush.msra.mxu0 %v1300
  %v1302 = vand.u32 %v28, 4294901760
  %v1303 = vsub.f32 %v28, %v1302
  %1304 = vmatpush.msra.mxu0 %v1303
  %v1305 = vand.u32 %v24, 4294901760
  %v1306 = vsub.f32 %v24, %v1305
  %1307 = vmatpush.msra.mxu0 %v1306
  %v1308 = vand.u32 %v20, 4294901760
  %v1309 = vsub.f32 %v20, %v1308
  %1310 = vmatmul.f32.gmra.mxu0 %v1309
  %v1311 = vpop.f32.mrf.mxu0
  %v1312 = vadd.f32 %v1258, %v1311
  %1313 = vdwg.mxu0
  %v1314 = vand.u32 %v84, 4294901760
  %1315 = vmatpush.msra.mxu0 %v1314
  %v1316 = vand.u32 %v80, 4294901760
  %1317 = vmatpush.msra.mxu0 %v1316
  %v1318 = vand.u32 %v76, 4294901760
  %1319 = vmatpush.msra.mxu0 %v1318
  %v1320 = vand.u32 %v72, 4294901760
  %1321 = vmatpush.msra.mxu0 %v1320
  %v1322 = vand.u32 %v68, 4294901760
  %1323 = vmatpush.msra.mxu0 %v1322
  %v1324 = vand.u32 %v64, 4294901760
  %1325 = vmatpush.msra.mxu0 %v1324
  %v1326 = vand.u32 %v60, 4294901760
  %1327 = vmatpush.msra.mxu0 %v1326
  %v1328 = vand.u32 %v56, 4294901760
  %1329 = vmatpush.msra.mxu0 %v1328
  %v1330 = vand.u32 %v52, 4294901760
  %1331 = vmatpush.msra.mxu0 %v1330
  %v1332 = vand.u32 %v48, 4294901760
  %1333 = vmatpush.msra.mxu0 %v1332
  %v1334 = vand.u32 %v44, 4294901760
  %1335 = vmatpush.msra.mxu0 %v1334
  %v1336 = vand.u32 %v40, 4294901760
  %1337 = vmatpush.msra.mxu0 %v1336
  %v1338 = vand.u32 %v36, 4294901760
  %1339 = vmatpush.msra.mxu0 %v1338
  %v1340 = vand.u32 %v32, 4294901760
  %1341 = vmatpush.msra.mxu0 %v1340
  %v1342 = vand.u32 %v28, 4294901760
  %1343 = vmatpush.msra.mxu0 %v1342
  %v1344 = vand.u32 %v24, 4294901760
  %1345 = vmatpush.msra.mxu0 %v1344
  %v1346 = vand.u32 %v20, 4294901760
  %v1347 = vsub.f32 %v20, %v1346
  %v1348 = vand.u32 %v1347, 4294901760
  %1349 = vmatmul.f32.gmra.mxu0 %v1348
  %v1350 = vpop.f32.mrf.mxu0
  %v1351 = vadd.f32 %v1312, %v1350
  %1352 = vdwg.mxu0
  %v1353 = vand.u32 %v84, 4294901760
  %v1354 = vsub.f32 %v84, %v1353
  %v1355 = vand.u32 %v1354, 4294901760
  %1356 = vmatpush.msra.mxu0 %v1355
  %v1357 = vand.u32 %v80, 4294901760
  %v1358 = vsub.f32 %v80, %v1357
  %v1359 = vand.u32 %v1358, 4294901760
  %1360 = vmatpush.msra.mxu0 %v1359
  %v1361 = vand.u32 %v76, 4294901760
  %v1362 = vsub.f32 %v76, %v1361
  %v1363 = vand.u32 %v1362, 4294901760
  %1364 = vmatpush.msra.mxu0 %v1363
  %v1365 = vand.u32 %v72, 4294901760
  %v1366 = vsub.f32 %v72, %v1365
  %v1367 = vand.u32 %v1366, 4294901760
  %1368 = vmatpush.msra.mxu0 %v1367
  %v1369 = vand.u32 %v68, 4294901760
  %v1370 = vsub.f32 %v68, %v1369
  %v1371 = vand.u32 %v1370, 4294901760
  %1372 = vmatpush.msra.mxu0 %v1371
  %v1373 = vand.u32 %v64, 4294901760
  %v1374 = vsub.f32 %v64, %v1373
  %v1375 = vand.u32 %v1374, 4294901760
  %1376 = vmatpush.msra.mxu0 %v1375
  %v1377 = vand.u32 %v60, 4294901760
  %v1378 = vsub.f32 %v60, %v1377
  %v1379 = vand.u32 %v1378, 4294901760
  %1380 = vmatpush.msra.mxu0 %v1379
  %v1381 = vand.u32 %v56, 4294901760
  %v1382 = vsub.f32 %v56, %v1381
  %v1383 = vand.u32 %v1382, 4294901760
  %1384 = vmatpush.msra.mxu0 %v1383
  %v1385 = vand.u32 %v52, 4294901760
  %v1386 = vsub.f32 %v52, %v1385
  %v1387 = vand.u32 %v1386, 4294901760
  %1388 = vmatpush.msra.mxu0 %v1387
  %v1389 = vand.u32 %v48, 4294901760
  %v1390 = vsub.f32 %v48, %v1389
  %v1391 = vand.u32 %v1390, 4294901760
  %1392 = vmatpush.msra.mxu0 %v1391
  %v1393 = vand.u32 %v44, 4294901760
  %v1394 = vsub.f32 %v44, %v1393
  %v1395 = vand.u32 %v1394, 4294901760
  %1396 = vmatpush.msra.mxu0 %v1395
  %v1397 = vand.u32 %v40, 4294901760
  %v1398 = vsub.f32 %v40, %v1397
  %v1399 = vand.u32 %v1398, 4294901760
  %1400 = vmatpush.msra.mxu0 %v1399
  %v1401 = vand.u32 %v36, 4294901760
  %v1402 = vsub.f32 %v36, %v1401
  %v1403 = vand.u32 %v1402, 4294901760
  %1404 = vmatpush.msra.mxu0 %v1403
  %v1405 = vand.u32 %v32, 4294901760
  %v1406 = vsub.f32 %v32, %v1405
  %v1407 = vand.u32 %v1406, 4294901760
  %1408 = vmatpush.msra.mxu0 %v1407
  %v1409 = vand.u32 %v28, 4294901760
  %v1410 = vsub.f32 %v28, %v1409
  %v1411 = vand.u32 %v1410, 4294901760
  %1412 = vmatpush.msra.mxu0 %v1411
  %v1413 = vand.u32 %v24, 4294901760
  %v1414 = vsub.f32 %v24, %v1413
  %v1415 = vand.u32 %v1414, 4294901760
  %1416 = vmatpush.msra.mxu0 %v1415
  %v1417 = vand.u32 %v20, 4294901760
  %1418 = vmatmul.f32.gmra.mxu0 %v1417
  %v1419 = vpop.f32.mrf.mxu0
  %v1420 = vadd.f32 %v1351, %v1419
  %1421 = vdwg.mxu0
  %v1422 = vand.u32 %v84, 4294901760
  %1423 = vmatpush.msra.mxu0 %v1422
  %v1424 = vand.u32 %v80, 4294901760
  %1425 = vmatpush.msra.mxu0 %v1424
  %v1426 = vand.u32 %v76, 4294901760
  %1427 = vmatpush.msra.mxu0 %v1426
  %v1428 = vand.u32 %v72, 4294901760
  %1429 = vmatpush.msra.mxu0 %v1428
  %v1430 = vand.u32 %v68, 4294901760
  %1431 = vmatpush.msra.mxu0 %v1430
  %v1432 = vand.u32 %v64, 4294901760
  %1433 = vmatpush.msra.mxu0 %v1432
  %v1434 = vand.u32 %v60, 4294901760
  %1435 = vmatpush.msra.mxu0 %v1434
  %v1436 = vand.u32 %v56, 4294901760
  %1437 = vmatpush.msra.mxu0 %v1436
  %v1438 = vand.u32 %v52, 4294901760
  %1439 = vmatpush.msra.mxu0 %v1438
  %v1440 = vand.u32 %v48, 4294901760
  %1441 = vmatpush.msra.mxu0 %v1440
  %v1442 = vand.u32 %v44, 4294901760
  %1443 = vmatpush.msra.mxu0 %v1442
  %v1444 = vand.u32 %v40, 4294901760
  %1445 = vmatpush.msra.mxu0 %v1444
  %v1446 = vand.u32 %v36, 4294901760
  %1447 = vmatpush.msra.mxu0 %v1446
  %v1448 = vand.u32 %v32, 4294901760
  %1449 = vmatpush.msra.mxu0 %v1448
  %v1450 = vand.u32 %v28, 4294901760
  %1451 = vmatpush.msra.mxu0 %v1450
  %v1452 = vand.u32 %v24, 4294901760
  %1453 = vmatpush.msra.mxu0 %v1452
  %v1454 = vand.u32 %v20, 4294901760
  %1455 = vmatmul.f32.gmra.mxu0 %v1454
  %v1456 = vpop.f32.mrf.mxu0
  %v1457 = vadd.f32 %v1420, %v1456
  %1458 = vdwg.mxu0
  %v1459 = vmax.f32 %v434, 0.0
  %v1460 = vmax.f32 %v775, 0.0
  %v1461 = vmax.f32 %v1116, 0.0
  %v1462 = vmax.f32 %v1457, 0.0
  %v1463 = vld [vmem:[%s3] sm:$0xff]
  %v1464 = vld [vmem:[%s3 + $0x8] sm:$0xff]
  %v1465 = vld [vmem:[%s3 + $0x10] sm:$0xff]
  %v1466 = vld [vmem:[%s3 + $0x18] sm:$0xff]
  %v1467 = vld [vmem:[%s3 + $0x20] sm:$0xff]
  %v1468 = vld [vmem:[%s3 + $0x28] sm:$0xff]
  %v1469 = vld [vmem:[%s3 + $0x30] sm:$0xff]
  %v1470 = vld [vmem:[%s3 + $0x38] sm:$0xff]
  %v1471 = vld [vmem:[%s3 + $0x40] sm:$0xff]
  %v1472 = vld [vmem:[%s3 + $0x48] sm:$0xff]
  %v1473 = vld [vmem:[%s3 + $0x50] sm:$0xff]
  %v1474 = vld [vmem:[%s3 + $0x58] sm:$0xff]
  %v1475 = vld [vmem:[%s3 + $0x60] sm:$0xff]
  %v1476 = vld [vmem:[%s3 + $0x68] sm:$0xff]
  %v1477 = vld [vmem:[%s3 + $0x70] sm:$0xff]
  %v1478 = vld [vmem:[%s3 + $0x78] sm:$0xff]
  %v1479 = vld [vmem:[%s3 + $0x80] sm:$0xff]
  %v1480 = vld [vmem:[%s3 + $0x88] sm:$0xff]
  %v1481 = vld [vmem:[%s3 + $0x90] sm:$0xff]
  %v1482 = vld [vmem:[%s3 + $0x98] sm:$0xff]
  %v1483 = vld [vmem:[%s3 + $0xa0] sm:$0xff]
  %v1484 = vld [vmem:[%s3 + $0xa8] sm:$0xff]
  %v1485 = vld [vmem:[%s3 + $0xb0] sm:$0xff]
  %v1486 = vld [vmem:[%s3 + $0xb8] sm:$0xff]
  %v1487 = vld [vmem:[%s3 + $0xc0] sm:$0xff]
  %v1488 = vld [vmem:[%s3 + $0xc8] sm:$0xff]
  %v1489 = vld [vmem:[%s3 + $0xd0] sm:$0xff]
  %v1490 = vld [vmem:[%s3 + $0xd8] sm:$0xff]
  %v1491 = vld [vmem:[%s3 + $0xe0] sm:$0xff]
  %v1492 = vld [vmem:[%s3 + $0xe8] sm:$0xff]
  %v1493 = vld [vmem:[%s3 + $0xf0] sm:$0xff]
  %v1494 = vld [vmem:[%s3 + $0xf8] sm:$0xff]
  %v1495 = vld [vmem:[%s3 + $0x100] sm:$0xff]
  %v1496 = vld [vmem:[%s3 + $0x108] sm:$0xff]
  %v1497 = vld [vmem:[%s3 + $0x110] sm:$0xff]
  %v1498 = vld [vmem:[%s3 + $0x118] sm:$0xff]
  %v1499 = vld [vmem:[%s3 + $0x120] sm:$0xff]
  %v1500 = vld [vmem:[%s3 + $0x128] sm:$0xff]
  %v1501 = vld [vmem:[%s3 + $0x130] sm:$0xff]
  %v1502 = vld [vmem:[%s3 + $0x138] sm:$0xff]
  %v1503 = vld [vmem:[%s3 + $0x140] sm:$0xff]
  %v1504 = vld [vmem:[%s3 + $0x148] sm:$0xff]
  %v1505 = vld [vmem:[%s3 + $0x150] sm:$0xff]
  %v1506 = vld [vmem:[%s3 + $0x158] sm:$0xff]
  %v1507 = vld [vmem:[%s3 + $0x160] sm:$0xff]
  %v1508 = vld [vmem:[%s3 + $0x168] sm:$0xff]
  %v1509 = vld [vmem:[%s3 + $0x170] sm:$0xff]
  %v1510 = vld [vmem:[%s3 + $0x178] sm:$0xff]
  %v1511 = vld [vmem:[%s3 + $0x180] sm:$0xff]
  %v1512 = vld [vmem:[%s3 + $0x188] sm:$0xff]
  %v1513 = vld [vmem:[%s3 + $0x190] sm:$0xff]
  %v1514 = vld [vmem:[%s3 + $0x198] sm:$0xff]
  %v1515 = vld [vmem:[%s3 + $0x1a0] sm:$0xff]
  %v1516 = vld [vmem:[%s3 + $0x1a8] sm:$0xff]
  %v1517 = vld [vmem:[%s3 + $0x1b0] sm:$0xff]
  %v1518 = vld [vmem:[%s3 + $0x1b8] sm:$0xff]
  %v1519 = vld [vmem:[%s3 + $0x1c0] sm:$0xff]
  %v1520 = vld [vmem:[%s3 + $0x1c8] sm:$0xff]
  %v1521 = vld [vmem:[%s3 + $0x1d0] sm:$0xff]
  %v1522 = vld [vmem:[%s3 + $0x1d8] sm:$0xff]
  %v1523 = vld [vmem:[%s3 + $0x1e0] sm:$0xff]
  %v1524 = vld [vmem:[%s3 + $0x1e8] sm:$0xff]
  %v1525 = vld [vmem:[%s3 + $0x1f0] sm:$0xff]
  %v1526 = vld [vmem:[%s3 + $0x1f8] sm:$0xff]
  %v1527 = vld [vmem:[%s4] sm:$0x1]
  %v1528 = vand.u32 %v1478, 4294901760
  %1529 = vmatpush.msra.mxu0 %v1528
  %v1530 = vand.u32 %v1477, 4294901760
  %1531 = vmatpush.msra.mxu0 %v1530
  %v1532 = vand.u32 %v1476, 4294901760
  %1533 = vmatpush.msra.mxu0 %v1532
  %v1534 = vand.u32 %v1475, 4294901760
  %1535 = vmatpush.msra.mxu0 %v1534
  %v1536 = vand.u32 %v1474, 4294901760
  %1537 = vmatpush.msra.mxu0 %v1536
  %v1538 = vand.u32 %v1473, 4294901760
  %1539 = vmatpush.msra.mxu0 %v1538
  %v1540 = vand.u32 %v1472, 4294901760
  %1541 = vmatpush.msra.mxu0 %v1540
  %v1542 = vand.u32 %v1471, 4294901760
  %1543 = vmatpush.msra.mxu0 %v1542
  %v1544 = vand.u32 %v1470, 4294901760
  %1545 = vmatpush.msra.mxu0 %v1544
  %v1546 = vand.u32 %v1469, 4294901760
  %1547 = vmatpush.msra.mxu0 %v1546
  %v1548 = vand.u32 %v1468, 4294901760
  %1549 = vmatpush.msra.mxu0 %v1548
  %v1550 = vand.u32 %v1467, 4294901760
  %1551 = vmatpush.msra.mxu0 %v1550
  %v1552 = vand.u32 %v1466, 4294901760
  %1553 = vmatpush.msra.mxu0 %v1552
  %v1554 = vand.u32 %v1465, 4294901760
  %1555 = vmatpush.msra.mxu0 %v1554
  %v1556 = vand.u32 %v1464, 4294901760
  %1557 = vmatpush.msra.mxu0 %v1556
  %v1558 = vand.u32 %v1463, 4294901760
  %1559 = vmatpush.msra.mxu0 %v1558
  %v1560 = vand.u32 %v1459, 4294901760
  %v1561 = vsub.f32 %v1459, %v1560
  %v1562 = vand.u32 %v1561, 4294901760
  %v1563 = vsub.f32 %v1561, %v1562
  %v1564 = vand.u32 %v1563, 4294901760
  %1565 = vmatmul.f32.gmra.mxu0 %v1564
  %v1566 = vpop.f32.mrf.mxu0
  %v1567 = vadd.f32 %v1527, %v1566
  %1568 = vdwg.mxu0
  %v1569 = vand.u32 %v1478, 4294901760
  %v1570 = vsub.f32 %v1478, %v1569
  %v1571 = vand.u32 %v1570, 4294901760
  %v1572 = vsub.f32 %v1570, %v1571
  %v1573 = vand.u32 %v1572, 4294901760
  %1574 = vmatpush.msra.mxu0 %v1573
  %v1575 = vand.u32 %v1477, 4294901760
  %v1576 = vsub.f32 %v1477, %v1575
  %v1577 = vand.u32 %v1576, 4294901760
  %v1578 = vsub.f32 %v1576, %v1577
  %v1579 = vand.u32 %v1578, 4294901760
  %1580 = vmatpush.msra.mxu0 %v1579
  %v1581 = vand.u32 %v1476, 4294901760
  %v1582 = vsub.f32 %v1476, %v1581
  %v1583 = vand.u32 %v1582, 4294901760
  %v1584 = vsub.f32 %v1582, %v1583
  %v1585 = vand.u32 %v1584, 4294901760
  %1586 = vmatpush.msra.mxu0 %v1585
  %v1587 = vand.u32 %v1475, 4294901760
  %v1588 = vsub.f32 %v1475, %v1587
  %v1589 = vand.u32 %v1588, 4294901760
  %v1590 = vsub.f32 %v1588, %v1589
  %v1591 = vand.u32 %v1590, 4294901760
  %1592 = vmatpush.msra.mxu0 %v1591
  %v1593 = vand.u32 %v1474, 4294901760
  %v1594 = vsub.f32 %v1474, %v1593
  %v1595 = vand.u32 %v1594, 4294901760
  %v1596 = vsub.f32 %v1594, %v1595
  %v1597 = vand.u32 %v1596, 4294901760
  %1598 = vmatpush.msra.mxu0 %v1597
  %v1599 = vand.u32 %v1473, 4294901760
  %v1600 = vsub.f32 %v1473, %v1599
  %v1601 = vand.u32 %v1600, 4294901760
  %v1602 = vsub.f32 %v1600, %v1601
  %v1603 = vand.u32 %v1602, 4294901760
  %1604 = vmatpush.msra.mxu0 %v1603
  %v1605 = vand.u32 %v1472, 4294901760
  %v1606 = vsub.f32 %v1472, %v1605
  %v1607 = vand.u32 %v1606, 4294901760
  %v1608 = vsub.f32 %v1606, %v1607
  %v1609 = vand.u32 %v1608, 4294901760
  %1610 = vmatpush.msra.mxu0 %v1609
  %v1611 = vand.u32 %v1471, 4294901760
  %v1612 = vsub.f32 %v1471, %v1611
  %v1613 = vand.u32 %v1612, 4294901760
  %v1614 = vsub.f32 %v1612, %v1613
  %v1615 = vand.u32 %v1614, 4294901760
  %1616 = vmatpush.msra.mxu0 %v1615
  %v1617 = vand.u32 %v1470, 4294901760
  %v1618 = vsub.f32 %v1470, %v1617
  %v1619 = vand.u32 %v1618, 4294901760
  %v1620 = vsub.f32 %v1618, %v1619
  %v1621 = vand.u32 %v1620, 4294901760
  %1622 = vmatpush.msra.mxu0 %v1621
  %v1623 = vand.u32 %v1469, 4294901760
  %v1624 = vsub.f32 %v1469, %v1623
  %v1625 = vand.u32 %v1624, 4294901760
  %v1626 = vsub.f32 %v1624, %v1625
  %v1627 = vand.u32 %v1626, 4294901760
  %1628 = vmatpush.msra.mxu0 %v1627
  %v1629 = vand.u32 %v1468, 4294901760
  %v1630 = vsub.f32 %v1468, %v1629
  %v1631 = vand.u32 %v1630, 4294901760
  %v1632 = vsub.f32 %v1630, %v1631
  %v1633 = vand.u32 %v1632, 4294901760
  %1634 = vmatpush.msra.mxu0 %v1633
  %v1635 = vand.u32 %v1467, 4294901760
  %v1636 = vsub.f32 %v1467, %v1635
  %v1637 = vand.u32 %v1636, 4294901760
  %v1638 = vsub.f32 %v1636, %v1637
  %v1639 = vand.u32 %v1638, 4294901760
  %1640 = vmatpush.msra.mxu0 %v1639
  %v1641 = vand.u32 %v1466, 4294901760
  %v1642 = vsub.f32 %v1466, %v1641
  %v1643 = vand.u32 %v1642, 4294901760
  %v1644 = vsub.f32 %v1642, %v1643
  %v1645 = vand.u32 %v1644, 4294901760
  %1646 = vmatpush.msra.mxu0 %v1645
  %v1647 = vand.u32 %v1465, 4294901760
  %v1648 = vsub.f32 %v1465, %v1647
  %v1649 = vand.u32 %v1648, 4294901760
  %v1650 = vsub.f32 %v1648, %v1649
  %v1651 = vand.u32 %v1650, 4294901760
  %1652 = vmatpush.msra.mxu0 %v1651
  %v1653 = vand.u32 %v1464, 4294901760
  %v1654 = vsub.f32 %v1464, %v1653
  %v1655 = vand.u32 %v1654, 4294901760
  %v1656 = vsub.f32 %v1654, %v1655
  %v1657 = vand.u32 %v1656, 4294901760
  %1658 = vmatpush.msra.mxu0 %v1657
  %v1659 = vand.u32 %v1463, 4294901760
  %v1660 = vsub.f32 %v1463, %v1659
  %v1661 = vand.u32 %v1660, 4294901760
  %v1662 = vsub.f32 %v1660, %v1661
  %v1663 = vand.u32 %v1662, 4294901760
  %1664 = vmatpush.msra.mxu0 %v1663
  %v1665 = vand.u32 %v1459, 4294901760
  %1666 = vmatmul.f32.gmra.mxu0 %v1665
  %v1667 = vpop.f32.mrf.mxu0
  %v1668 = vadd.f32 %v1567, %v1667
  %1669 = vdwg.mxu0
  %v1670 = vand.u32 %v1478, 4294901760
  %v1671 = vsub.f32 %v1478, %v1670
  %1672 = vmatpush.msra.mxu0 %v1671
  %v1673 = vand.u32 %v1477, 4294901760
  %v1674 = vsub.f32 %v1477, %v1673
  %1675 = vmatpush.msra.mxu0 %v1674
  %v1676 = vand.u32 %v1476, 4294901760
  %v1677 = vsub.f32 %v1476, %v1676
  %1678 = vmatpush.msra.mxu0 %v1677
  %v1679 = vand.u32 %v1475, 4294901760
  %v1680 = vsub.f32 %v1475, %v1679
  %1681 = vmatpush.msra.mxu0 %v1680
  %v1682 = vand.u32 %v1474, 4294901760
  %v1683 = vsub.f32 %v1474, %v1682
  %1684 = vmatpush.msra.mxu0 %v1683
  %v1685 = vand.u32 %v1473, 4294901760
  %v1686 = vsub.f32 %v1473, %v1685
  %1687 = vmatpush.msra.mxu0 %v1686
  %v1688 = vand.u32 %v1472, 4294901760
  %v1689 = vsub.f32 %v1472, %v1688
  %1690 = vmatpush.msra.mxu0 %v1689
  %v1691 = vand.u32 %v1471, 4294901760
  %v1692 = vsub.f32 %v1471, %v1691
  %1693 = vmatpush.msra.mxu0 %v1692
  %v1694 = vand.u32 %v1470, 4294901760
  %v1695 = vsub.f32 %v1470, %v1694
  %1696 = vmatpush.msra.mxu0 %v1695
  %v1697 = vand.u32 %v1469, 4294901760
  %v1698 = vsub.f32 %v1469, %v1697
  %1699 = vmatpush.msra.mxu0 %v1698
  %v1700 = vand.u32 %v1468, 4294901760
  %v1701 = vsub.f32 %v1468, %v1700
  %1702 = vmatpush.msra.mxu0 %v1701
  %v1703 = vand.u32 %v1467, 4294901760
  %v1704 = vsub.f32 %v1467, %v1703
  %1705 = vmatpush.msra.mxu0 %v1704
  %v1706 = vand.u32 %v1466, 4294901760
  %v1707 = vsub.f32 %v1466, %v1706
  %1708 = vmatpush.msra.mxu0 %v1707
  %v1709 = vand.u32 %v1465, 4294901760
  %v1710 = vsub.f32 %v1465, %v1709
  %1711 = vmatpush.msra.mxu0 %v1710
  %v1712 = vand.u32 %v1464, 4294901760
  %v1713 = vsub.f32 %v1464, %v1712
  %1714 = vmatpush.msra.mxu0 %v1713
  %v1715 = vand.u32 %v1463, 4294901760
  %v1716 = vsub.f32 %v1463, %v1715
  %1717 = vmatpush.msra.mxu0 %v1716
  %v1718 = vand.u32 %v1459, 4294901760
  %v1719 = vsub.f32 %v1459, %v1718
  %1720 = vmatmul.f32.gmra.mxu0 %v1719
  %v1721 = vpop.f32.mrf.mxu0
  %v1722 = vadd.f32 %v1668, %v1721
  %1723 = vdwg.mxu0
  %v1724 = vand.u32 %v1478, 4294901760
  %1725 = vmatpush.msra.mxu0 %v1724
  %v1726 = vand.u32 %v1477, 4294901760
  %1727 = vmatpush.msra.mxu0 %v1726
  %v1728 = vand.u32 %v1476, 4294901760
  %1729 = vmatpush.msra.mxu0 %v1728
  %v1730 = vand.u32 %v1475, 4294901760
  %1731 = vmatpush.msra.mxu0 %v1730
  %v1732 = vand.u32 %v1474, 4294901760
  %1733 = vmatpush.msra.mxu0 %v1732
  %v1734 = vand.u32 %v1473, 4294901760
  %1735 = vmatpush.msra.mxu0 %v1734
  %v1736 = vand.u32 %v1472, 4294901760
  %1737 = vmatpush.msra.mxu0 %v1736
  %v1738 = vand.u32 %v1471, 4294901760
  %1739 = vmatpush.msra.mxu0 %v1738
  %v1740 = vand.u32 %v1470, 4294901760
  %1741 = vmatpush.msra.mxu0 %v1740
  %v1742 = vand.u32 %v1469, 4294901760
  %1743 = vmatpush.msra.mxu0 %v1742
  %v1744 = vand.u32 %v1468, 4294901760
  %1745 = vmatpush.msra.mxu0 %v1744
  %v1746 = vand.u32 %v1467, 4294901760
  %1747 = vmatpush.msra.mxu0 %v1746
  %v1748 = vand.u32 %v1466, 4294901760
  %1749 = vmatpush.msra.mxu0 %v1748
  %v1750 = vand.u32 %v1465, 4294901760
  %1751 = vmatpush.msra.mxu0 %v1750
  %v1752 = vand.u32 %v1464, 4294901760
  %1753 = vmatpush.msra.mxu0 %v1752
  %v1754 = vand.u32 %v1463, 4294901760
  %1755 = vmatpush.msra.mxu0 %v1754
  %v1756 = vand.u32 %v1459, 4294901760
  %v1757 = vsub.f32 %v1459, %v1756
  %v1758 = vand.u32 %v1757, 4294901760
  %1759 = vmatmul.f32.gmra.mxu0 %v1758
  %v1760 = vpop.f32.mrf.mxu0
  %v1761 = vadd.f32 %v1722, %v1760
  %1762 = vdwg.mxu0
  %v1763 = vand.u32 %v1478, 4294901760
  %v1764 = vsub.f32 %v1478, %v1763
  %v1765 = vand.u32 %v1764, 4294901760
  %1766 = vmatpush.msra.mxu0 %v1765
  %v1767 = vand.u32 %v1477, 4294901760
  %v1768 = vsub.f32 %v1477, %v1767
  %v1769 = vand.u32 %v1768, 4294901760
  %1770 = vmatpush.msra.mxu0 %v1769
  %v1771 = vand.u32 %v1476, 4294901760
  %v1772 = vsub.f32 %v1476, %v1771
  %v1773 = vand.u32 %v1772, 4294901760
  %1774 = vmatpush.msra.mxu0 %v1773
  %v1775 = vand.u32 %v1475, 4294901760
  %v1776 = vsub.f32 %v1475, %v1775
  %v1777 = vand.u32 %v1776, 4294901760
  %1778 = vmatpush.msra.mxu0 %v1777
  %v1779 = vand.u32 %v1474, 4294901760
  %v1780 = vsub.f32 %v1474, %v1779
  %v1781 = vand.u32 %v1780, 4294901760
  %1782 = vmatpush.msra.mxu0 %v1781
  %v1783 = vand.u32 %v1473, 4294901760
  %v1784 = vsub.f32 %v1473, %v1783
  %v1785 = vand.u32 %v1784, 4294901760
  %1786 = vmatpush.msra.mxu0 %v1785
  %v1787 = vand.u32 %v1472, 4294901760
  %v1788 = vsub.f32 %v1472, %v1787
  %v1789 = vand.u32 %v1788, 4294901760
  %1790 = vmatpush.msra.mxu0 %v1789
  %v1791 = vand.u32 %v1471, 4294901760
  %v1792 = vsub.f32 %v1471, %v1791
  %v1793 = vand.u32 %v1792, 4294901760
  %1794 = vmatpush.msra.mxu0 %v1793
  %v1795 = vand.u32 %v1470, 4294901760
  %v1796 = vsub.f32 %v1470, %v1795
  %v1797 = vand.u32 %v1796, 4294901760
  %1798 = vmatpush.msra.mxu0 %v1797
  %v1799 = vand.u32 %v1469, 4294901760
  %v1800 = vsub.f32 %v1469, %v1799
  %v1801 = vand.u32 %v1800, 4294901760
  %1802 = vmatpush.msra.mxu0 %v1801
  %v1803 = vand.u32 %v1468, 4294901760
  %v1804 = vsub.f32 %v1468, %v1803
  %v1805 = vand.u32 %v1804, 4294901760
  %1806 = vmatpush.msra.mxu0 %v1805
  %v1807 = vand.u32 %v1467, 4294901760
  %v1808 = vsub.f32 %v1467, %v1807
  %v1809 = vand.u32 %v1808, 4294901760
  %1810 = vmatpush.msra.mxu0 %v1809
  %v1811 = vand.u32 %v1466, 4294901760
  %v1812 = vsub.f32 %v1466, %v1811
  %v1813 = vand.u32 %v1812, 4294901760
  %1814 = vmatpush.msra.mxu0 %v1813
  %v1815 = vand.u32 %v1465, 4294901760
  %v1816 = vsub.f32 %v1465, %v1815
  %v1817 = vand.u32 %v1816, 4294901760
  %1818 = vmatpush.msra.mxu0 %v1817
  %v1819 = vand.u32 %v1464, 4294901760
  %v1820 = vsub.f32 %v1464, %v1819
  %v1821 = vand.u32 %v1820, 4294901760
  %1822 = vmatpush.msra.mxu0 %v1821
  %v1823 = vand.u32 %v1463, 4294901760
  %v1824 = vsub.f32 %v1463, %v1823
  %v1825 = vand.u32 %v1824, 4294901760
  %1826 = vmatpush.msra.mxu0 %v1825
  %v1827 = vand.u32 %v1459, 4294901760
  %1828 = vmatmul.f32.gmra.mxu0 %v1827
  %v1829 = vpop.f32.mrf.mxu0
  %v1830 = vadd.f32 %v1761, %v1829
  %1831 = vdwg.mxu0
  %v1832 = vand.u32 %v1478, 4294901760
  %1833 = vmatpush.msra.mxu0 %v1832
  %v1834 = vand.u32 %v1477, 4294901760
  %1835 = vmatpush.msra.mxu0 %v1834
  %v1836 = vand.u32 %v1476, 4294901760
  %1837 = vmatpush.msra.mxu0 %v1836
  %v1838 = vand.u32 %v1475, 4294901760
  %1839 = vmatpush.msra.mxu0 %v1838
  %v1840 = vand.u32 %v1474, 4294901760
  %1841 = vmatpush.msra.mxu0 %v1840
  %v1842 = vand.u32 %v1473, 4294901760
  %1843 = vmatpush.msra.mxu0 %v1842
  %v1844 = vand.u32 %v1472, 4294901760
  %1845 = vmatpush.msra.mxu0 %v1844
  %v1846 = vand.u32 %v1471, 4294901760
  %1847 = vmatpush.msra.mxu0 %v1846
  %v1848 = vand.u32 %v1470, 4294901760
  %1849 = vmatpush.msra.mxu0 %v1848
  %v1850 = vand.u32 %v1469, 4294901760
  %1851 = vmatpush.msra.mxu0 %v1850
  %v1852 = vand.u32 %v1468, 4294901760
  %1853 = vmatpush.msra.mxu0 %v1852
  %v1854 = vand.u32 %v1467, 4294901760
  %1855 = vmatpush.msra.mxu0 %v1854
  %v1856 = vand.u32 %v1466, 4294901760
  %1857 = vmatpush.msra.mxu0 %v1856
  %v1858 = vand.u32 %v1465, 4294901760
  %1859 = vmatpush.msra.mxu0 %v1858
  %v1860 = vand.u32 %v1464, 4294901760
  %1861 = vmatpush.msra.mxu0 %v1860
  %v1862 = vand.u32 %v1463, 4294901760
  %1863 = vmatpush.msra.mxu0 %v1862
  %v1864 = vand.u32 %v1459, 4294901760
  %1865 = vmatmul.f32.gmra.mxu0 %v1864
  %v1866 = vpop.f32.mrf.mxu0
  %v1867 = vadd.f32 %v1830, %v1866
  %1868 = vdwg.mxu0
  %v1869 = vand.u32 %v1494, 4294901760
  %1870 = vmatpush.msra.mxu0 %v1869
  %v1871 = vand.u32 %v1493, 4294901760
  %1872 = vmatpush.msra.mxu0 %v1871
  %v1873 = vand.u32 %v1492, 4294901760
  %1874 = vmatpush.msra.mxu0 %v1873
  %v1875 = vand.u32 %v1491, 4294901760
  %1876 = vmatpush.msra.mxu0 %v1875
  %v1877 = vand.u32 %v1490, 4294901760
  %1878 = vmatpush.msra.mxu0 %v1877
  %v1879 = vand.u32 %v1489, 4294901760
  %1880 = vmatpush.msra.mxu0 %v1879
  %v1881 = vand.u32 %v1488, 4294901760
  %1882 = vmatpush.msra.mxu0 %v1881
  %v1883 = vand.u32 %v1487, 4294901760
  %1884 = vmatpush.msra.mxu0 %v1883
  %v1885 = vand.u32 %v1486, 4294901760
  %1886 = vmatpush.msra.mxu0 %v1885
  %v1887 = vand.u32 %v1485, 4294901760
  %1888 = vmatpush.msra.mxu0 %v1887
  %v1889 = vand.u32 %v1484, 4294901760
  %1890 = vmatpush.msra.mxu0 %v1889
  %v1891 = vand.u32 %v1483, 4294901760
  %1892 = vmatpush.msra.mxu0 %v1891
  %v1893 = vand.u32 %v1482, 4294901760
  %1894 = vmatpush.msra.mxu0 %v1893
  %v1895 = vand.u32 %v1481, 4294901760
  %1896 = vmatpush.msra.mxu0 %v1895
  %v1897 = vand.u32 %v1480, 4294901760
  %1898 = vmatpush.msra.mxu0 %v1897
  %v1899 = vand.u32 %v1479, 4294901760
  %1900 = vmatpush.msra.mxu0 %v1899
  %v1901 = vand.u32 %v1460, 4294901760
  %v1902 = vsub.f32 %v1460, %v1901
  %v1903 = vand.u32 %v1902, 4294901760
  %v1904 = vsub.f32 %v1902, %v1903
  %v1905 = vand.u32 %v1904, 4294901760
  %1906 = vmatmul.f32.gmra.mxu0 %v1905
  %v1907 = vpop.f32.mrf.mxu0
  %v1908 = vadd.f32 %v1867, %v1907
  %1909 = vdwg.mxu0
  %v1910 = vand.u32 %v1494, 4294901760
  %v1911 = vsub.f32 %v1494, %v1910
  %v1912 = vand.u32 %v1911, 4294901760
  %v1913 = vsub.f32 %v1911, %v1912
  %v1914 = vand.u32 %v1913, 4294901760
  %1915 = vmatpush.msra.mxu0 %v1914
  %v1916 = vand.u32 %v1493, 4294901760
  %v1917 = vsub.f32 %v1493, %v1916
  %v1918 = vand.u32 %v1917, 4294901760
  %v1919 = vsub.f32 %v1917, %v1918
  %v1920 = vand.u32 %v1919, 4294901760
  %1921 = vmatpush.msra.mxu0 %v1920
  %v1922 = vand.u32 %v1492, 4294901760
  %v1923 = vsub.f32 %v1492, %v1922
  %v1924 = vand.u32 %v1923, 4294901760
  %v1925 = vsub.f32 %v1923, %v1924
  %v1926 = vand.u32 %v1925, 4294901760
  %1927 = vmatpush.msra.mxu0 %v1926
  %v1928 = vand.u32 %v1491, 4294901760
  %v1929 = vsub.f32 %v1491, %v1928
  %v1930 = vand.u32 %v1929, 4294901760
  %v1931 = vsub.f32 %v1929, %v1930
  %v1932 = vand.u32 %v1931, 4294901760
  %1933 = vmatpush.msra.mxu0 %v1932
  %v1934 = vand.u32 %v1490, 4294901760
  %v1935 = vsub.f32 %v1490, %v1934
  %v1936 = vand.u32 %v1935, 4294901760
  %v1937 = vsub.f32 %v1935, %v1936
  %v1938 = vand.u32 %v1937, 4294901760
  %1939 = vmatpush.msra.mxu0 %v1938
  %v1940 = vand.u32 %v1489, 4294901760
  %v1941 = vsub.f32 %v1489, %v1940
  %v1942 = vand.u32 %v1941, 4294901760
  %v1943 = vsub.f32 %v1941, %v1942
  %v1944 = vand.u32 %v1943, 4294901760
  %1945 = vmatpush.msra.mxu0 %v1944
  %v1946 = vand.u32 %v1488, 4294901760
  %v1947 = vsub.f32 %v1488, %v1946
  %v1948 = vand.u32 %v1947, 4294901760
  %v1949 = vsub.f32 %v1947, %v1948
  %v1950 = vand.u32 %v1949, 4294901760
  %1951 = vmatpush.msra.mxu0 %v1950
  %v1952 = vand.u32 %v1487, 4294901760
  %v1953 = vsub.f32 %v1487, %v1952
  %v1954 = vand.u32 %v1953, 4294901760
  %v1955 = vsub.f32 %v1953, %v1954
  %v1956 = vand.u32 %v1955, 4294901760
  %1957 = vmatpush.msra.mxu0 %v1956
  %v1958 = vand.u32 %v1486, 4294901760
  %v1959 = vsub.f32 %v1486, %v1958
  %v1960 = vand.u32 %v1959, 4294901760
  %v1961 = vsub.f32 %v1959, %v1960
  %v1962 = vand.u32 %v1961, 4294901760
  %1963 = vmatpush.msra.mxu0 %v1962
  %v1964 = vand.u32 %v1485, 4294901760
  %v1965 = vsub.f32 %v1485, %v1964
  %v1966 = vand.u32 %v1965, 4294901760
  %v1967 = vsub.f32 %v1965, %v1966
  %v1968 = vand.u32 %v1967, 4294901760
  %1969 = vmatpush.msra.mxu0 %v1968
  %v1970 = vand.u32 %v1484, 4294901760
  %v1971 = vsub.f32 %v1484, %v1970
  %v1972 = vand.u32 %v1971, 4294901760
  %v1973 = vsub.f32 %v1971, %v1972
  %v1974 = vand.u32 %v1973, 4294901760
  %1975 = vmatpush.msra.mxu0 %v1974
  %v1976 = vand.u32 %v1483, 4294901760
  %v1977 = vsub.f32 %v1483, %v1976
  %v1978 = vand.u32 %v1977, 4294901760
  %v1979 = vsub.f32 %v1977, %v1978
  %v1980 = vand.u32 %v1979, 4294901760
  %1981 = vmatpush.msra.mxu0 %v1980
  %v1982 = vand.u32 %v1482, 4294901760
  %v1983 = vsub.f32 %v1482, %v1982
  %v1984 = vand.u32 %v1983, 4294901760
  %v1985 = vsub.f32 %v1983, %v1984
  %v1986 = vand.u32 %v1985, 4294901760
  %1987 = vmatpush.msra.mxu0 %v1986
  %v1988 = vand.u32 %v1481, 4294901760
  %v1989 = vsub.f32 %v1481, %v1988
  %v1990 = vand.u32 %v1989, 4294901760
  %v1991 = vsub.f32 %v1989, %v1990
  %v1992 = vand.u32 %v1991, 4294901760
  %1993 = vmatpush.msra.mxu0 %v1992
  %v1994 = vand.u32 %v1480, 4294901760
  %v1995 = vsub.f32 %v1480, %v1994
  %v1996 = vand.u32 %v1995, 4294901760
  %v1997 = vsub.f32 %v1995, %v1996
  %v1998 = vand.u32 %v1997, 4294901760
  %1999 = vmatpush.msra.mxu0 %v1998
  %v2000 = vand.u32 %v1479, 4294901760
  %v2001 = vsub.f32 %v1479, %v2000
  %v2002 = vand.u32 %v2001, 4294901760
  %v2003 = vsub.f32 %v2001, %v2002
  %v2004 = vand.u32 %v2003, 4294901760
  %2005 = vmatpush.msra.mxu0 %v2004
  %v2006 = vand.u32 %v1460, 4294901760
  %2007 = vmatmul.f32.gmra.mxu0 %v2006
  %v2008 = vpop.f32.mrf.mxu0
  %v2009 = vadd.f32 %v1908, %v2008
  %2010 = vdwg.mxu0
  %v2011 = vand.u32 %v1494, 4294901760
  %v2012 = vsub.f32 %v1494, %v2011
  %2013 = vmatpush.msra.mxu0 %v2012
  %v2014 = vand.u32 %v1493, 4294901760
  %v2015 = vsub.f32 %v1493, %v2014
  %2016 = vmatpush.msra.mxu0 %v2015
  %v2017 = vand.u32 %v1492, 4294901760
  %v2018 = vsub.f32 %v1492, %v2017
  %2019 = vmatpush.msra.mxu0 %v2018
  %v2020 = vand.u32 %v1491, 4294901760
  %v2021 = vsub.f32 %v1491, %v2020
  %2022 = vmatpush.msra.mxu0 %v2021
  %v2023 = vand.u32 %v1490, 4294901760
  %v2024 = vsub.f32 %v1490, %v2023
  %2025 = vmatpush.msra.mxu0 %v2024
  %v2026 = vand.u32 %v1489, 4294901760
  %v2027 = vsub.f32 %v1489, %v2026
  %2028 = vmatpush.msra.mxu0 %v2027
  %v2029 = vand.u32 %v1488, 4294901760
  %v2030 = vsub.f32 %v1488, %v2029
  %2031 = vmatpush.msra.mxu0 %v2030
  %v2032 = vand.u32 %v1487, 4294901760
  %v2033 = vsub.f32 %v1487, %v2032
  %2034 = vmatpush.msra.mxu0 %v2033
  %v2035 = vand.u32 %v1486, 4294901760
  %v2036 = vsub.f32 %v1486, %v2035
  %2037 = vmatpush.msra.mxu0 %v2036
  %v2038 = vand.u32 %v1485, 4294901760
  %v2039 = vsub.f32 %v1485, %v2038
  %2040 = vmatpush.msra.mxu0 %v2039
  %v2041 = vand.u32 %v1484, 4294901760
  %v2042 = vsub.f32 %v1484, %v2041
  %2043 = vmatpush.msra.mxu0 %v2042
  %v2044 = vand.u32 %v1483, 4294901760
  %v2045 = vsub.f32 %v1483, %v2044
  %2046 = vmatpush.msra.mxu0 %v2045
  %v2047 = vand.u32 %v1482, 4294901760
  %v2048 = vsub.f32 %v1482, %v2047
  %2049 = vmatpush.msra.mxu0 %v2048
  %v2050 = vand.u32 %v1481, 4294901760
  %v2051 = vsub.f32 %v1481, %v2050
  %2052 = vmatpush.msra.mxu0 %v2051
  %v2053 = vand.u32 %v1480, 4294901760
  %v2054 = vsub.f32 %v1480, %v2053
  %2055 = vmatpush.msra.mxu0 %v2054
  %v2056 = vand.u32 %v1479, 4294901760
  %v2057 = vsub.f32 %v1479, %v2056
  %2058 = vmatpush.msra.mxu0 %v2057
  %v2059 = vand.u32 %v1460, 4294901760
  %v2060 = vsub.f32 %v1460, %v2059
  %2061 = vmatmul.f32.gmra.mxu0 %v2060
  %v2062 = vpop.f32.mrf.mxu0
  %v2063 = vadd.f32 %v2009, %v2062
  %2064 = vdwg.mxu0
  %v2065 = vand.u32 %v1494, 4294901760
  %2066 = vmatpush.msra.mxu0 %v2065
  %v2067 = vand.u32 %v1493, 4294901760
  %2068 = vmatpush.msra.mxu0 %v2067
  %v2069 = vand.u32 %v1492, 4294901760
  %2070 = vmatpush.msra.mxu0 %v2069
  %v2071 = vand.u32 %v1491, 4294901760
  %2072 = vmatpush.msra.mxu0 %v2071
  %v2073 = vand.u32 %v1490, 4294901760
  %2074 = vmatpush.msra.mxu0 %v2073
  %v2075 = vand.u32 %v1489, 4294901760
  %2076 = vmatpush.msra.mxu0 %v2075
  %v2077 = vand.u32 %v1488, 4294901760
  %2078 = vmatpush.msra.mxu0 %v2077
  %v2079 = vand.u32 %v1487, 4294901760
  %2080 = vmatpush.msra.mxu0 %v2079
  %v2081 = vand.u32 %v1486, 4294901760
  %2082 = vmatpush.msra.mxu0 %v2081
  %v2083 = vand.u32 %v1485, 4294901760
  %2084 = vmatpush.msra.mxu0 %v2083
  %v2085 = vand.u32 %v1484, 4294901760
  %2086 = vmatpush.msra.mxu0 %v2085
  %v2087 = vand.u32 %v1483, 4294901760
  %2088 = vmatpush.msra.mxu0 %v2087
  %v2089 = vand.u32 %v1482, 4294901760
  %2090 = vmatpush.msra.mxu0 %v2089
  %v2091 = vand.u32 %v1481, 4294901760
  %2092 = vmatpush.msra.mxu0 %v2091
  %v2093 = vand.u32 %v1480, 4294901760
  %2094 = vmatpush.msra.mxu0 %v2093
  %v2095 = vand.u32 %v1479, 4294901760
  %2096 = vmatpush.msra.mxu0 %v2095
  %v2097 = vand.u32 %v1460, 4294901760
  %v2098 = vsub.f32 %v1460, %v2097
  %v2099 = vand.u32 %v2098, 4294901760
  %2100 = vmatmul.f32.gmra.mxu0 %v2099
  %v2101 = vpop.f32.mrf.mxu0
  %v2102 = vadd.f32 %v2063, %v2101
  %2103 = vdwg.mxu0
  %v2104 = vand.u32 %v1494, 4294901760
  %v2105 = vsub.f32 %v1494, %v2104
  %v2106 = vand.u32 %v2105, 4294901760
  %2107 = vmatpush.msra.mxu0 %v2106
  %v2108 = vand.u32 %v1493, 4294901760
  %v2109 = vsub.f32 %v1493, %v2108
  %v2110 = vand.u32 %v2109, 4294901760
  %2111 = vmatpush.msra.mxu0 %v2110
  %v2112 = vand.u32 %v1492, 4294901760
  %v2113 = vsub.f32 %v1492, %v2112
  %v2114 = vand.u32 %v2113, 4294901760
  %2115 = vmatpush.msra.mxu0 %v2114
  %v2116 = vand.u32 %v1491, 4294901760
  %v2117 = vsub.f32 %v1491, %v2116
  %v2118 = vand.u32 %v2117, 4294901760
  %2119 = vmatpush.msra.mxu0 %v2118
  %v2120 = vand.u32 %v1490, 4294901760
  %v2121 = vsub.f32 %v1490, %v2120
  %v2122 = vand.u32 %v2121, 4294901760
  %2123 = vmatpush.msra.mxu0 %v2122
  %v2124 = vand.u32 %v1489, 4294901760
  %v2125 = vsub.f32 %v1489, %v2124
  %v2126 = vand.u32 %v2125, 4294901760
  %2127 = vmatpush.msra.mxu0 %v2126
  %v2128 = vand.u32 %v1488, 4294901760
  %v2129 = vsub.f32 %v1488, %v2128
  %v2130 = vand.u32 %v2129, 4294901760
  %2131 = vmatpush.msra.mxu0 %v2130
  %v2132 = vand.u32 %v1487, 4294901760
  %v2133 = vsub.f32 %v1487, %v2132
  %v2134 = vand.u32 %v2133, 4294901760
  %2135 = vmatpush.msra.mxu0 %v2134
  %v2136 = vand.u32 %v1486, 4294901760
  %v2137 = vsub.f32 %v1486, %v2136
  %v2138 = vand.u32 %v2137, 4294901760
  %2139 = vmatpush.msra.mxu0 %v2138
  %v2140 = vand.u32 %v1485, 4294901760
  %v2141 = vsub.f32 %v1485, %v2140
  %v2142 = vand.u32 %v2141, 4294901760
  %2143 = vmatpush.msra.mxu0 %v2142
  %v2144 = vand.u32 %v1484, 4294901760
  %v2145 = vsub.f32 %v1484, %v2144
  %v2146 = vand.u32 %v2145, 4294901760
  %2147 = vmatpush.msra.mxu0 %v2146
  %v2148 = vand.u32 %v1483, 4294901760
  %v2149 = vsub.f32 %v1483, %v2148
  %v2150 = vand.u32 %v2149, 4294901760
  %2151 = vmatpush.msra.mxu0 %v2150
  %v2152 = vand.u32 %v1482, 4294901760
  %v2153 = vsub.f32 %v1482, %v2152
  %v2154 = vand.u32 %v2153, 4294901760
  %2155 = vmatpush.msra.mxu0 %v2154
  %v2156 = vand.u32 %v1481, 4294901760
  %v2157 = vsub.f32 %v1481, %v2156
  %v2158 = vand.u32 %v2157, 4294901760
  %2159 = vmatpush.msra.mxu0 %v2158
  %v2160 = vand.u32 %v1480, 4294901760
  %v2161 = vsub.f32 %v1480, %v2160
  %v2162 = vand.u32 %v2161, 4294901760
  %2163 = vmatpush.msra.mxu0 %v2162
  %v2164 = vand.u32 %v1479, 4294901760
  %v2165 = vsub.f32 %v1479, %v2164
  %v2166 = vand.u32 %v2165, 4294901760
  %2167 = vmatpush.msra.mxu0 %v2166
  %v2168 = vand.u32 %v1460, 4294901760
  %2169 = vmatmul.f32.gmra.mxu0 %v2168
  %v2170 = vpop.f32.mrf.mxu0
  %v2171 = vadd.f32 %v2102, %v2170
  %2172 = vdwg.mxu0
  %v2173 = vand.u32 %v1494, 4294901760
  %2174 = vmatpush.msra.mxu0 %v2173
  %v2175 = vand.u32 %v1493, 4294901760
  %2176 = vmatpush.msra.mxu0 %v2175
  %v2177 = vand.u32 %v1492, 4294901760
  %2178 = vmatpush.msra.mxu0 %v2177
  %v2179 = vand.u32 %v1491, 4294901760
  %2180 = vmatpush.msra.mxu0 %v2179
  %v2181 = vand.u32 %v1490, 4294901760
  %2182 = vmatpush.msra.mxu0 %v2181
  %v2183 = vand.u32 %v1489, 4294901760
  %2184 = vmatpush.msra.mxu0 %v2183
  %v2185 = vand.u32 %v1488, 4294901760
  %2186 = vmatpush.msra.mxu0 %v2185
  %v2187 = vand.u32 %v1487, 4294901760
  %2188 = vmatpush.msra.mxu0 %v2187
  %v2189 = vand.u32 %v1486, 4294901760
  %2190 = vmatpush.msra.mxu0 %v2189
  %v2191 = vand.u32 %v1485, 4294901760
  %2192 = vmatpush.msra.mxu0 %v2191
  %v2193 = vand.u32 %v1484, 4294901760
  %2194 = vmatpush.msra.mxu0 %v2193
  %v2195 = vand.u32 %v1483, 4294901760
  %2196 = vmatpush.msra.mxu0 %v2195
  %v2197 = vand.u32 %v1482, 4294901760
  %2198 = vmatpush.msra.mxu0 %v2197
  %v2199 = vand.u32 %v1481, 4294901760
  %2200 = vmatpush.msra.mxu0 %v2199
  %v2201 = vand.u32 %v1480, 4294901760
  %2202 = vmatpush.msra.mxu0 %v2201
  %v2203 = vand.u32 %v1479, 4294901760
  %2204 = vmatpush.msra.mxu0 %v2203
  %v2205 = vand.u32 %v1460, 4294901760
  %2206 = vmatmul.f32.gmra.mxu0 %v2205
  %v2207 = vpop.f32.mrf.mxu0
  %v2208 = vadd.f32 %v2171, %v2207
  %2209 = vdwg.mxu0
  %v2210 = vand.u32 %v1510, 4294901760
  %2211 = vmatpush.msra.mxu0 %v2210
  %v2212 = vand.u32 %v1509, 4294901760
  %2213 = vmatpush.msra.mxu0 %v2212
  %v2214 = vand.u32 %v1508, 4294901760
  %2215 = vmatpush.msra.mxu0 %v2214
  %v2216 = vand.u32 %v1507, 4294901760
  %2217 = vmatpush.msra.mxu0 %v2216
  %v2218 = vand.u32 %v1506, 4294901760
  %2219 = vmatpush.msra.mxu0 %v2218
  %v2220 = vand.u32 %v1505, 4294901760
  %2221 = vmatpush.msra.mxu0 %v2220
  %v2222 = vand.u32 %v1504, 4294901760
  %2223 = vmatpush.msra.mxu0 %v2222
  %v2224 = vand.u32 %v1503, 4294901760
  %2225 = vmatpush.msra.mxu0 %v2224
  %v2226 = vand.u32 %v1502, 4294901760
  %2227 = vmatpush.msra.mxu0 %v2226
  %v2228 = vand.u32 %v1501, 4294901760
  %2229 = vmatpush.msra.mxu0 %v2228
  %v2230 = vand.u32 %v1500, 4294901760
  %2231 = vmatpush.msra.mxu0 %v2230
  %v2232 = vand.u32 %v1499, 4294901760
  %2233 = vmatpush.msra.mxu0 %v2232
  %v2234 = vand.u32 %v1498, 4294901760
  %2235 = vmatpush.msra.mxu0 %v2234
  %v2236 = vand.u32 %v1497, 4294901760
  %2237 = vmatpush.msra.mxu0 %v2236
  %v2238 = vand.u32 %v1496, 4294901760
  %2239 = vmatpush.msra.mxu0 %v2238
  %v2240 = vand.u32 %v1495, 4294901760
  %2241 = vmatpush.msra.mxu0 %v2240
  %v2242 = vand.u32 %v1461, 4294901760
  %v2243 = vsub.f32 %v1461, %v2242
  %v2244 = vand.u32 %v2243, 4294901760
  %v2245 = vsub.f32 %v2243, %v2244
  %v2246 = vand.u32 %v2245, 4294901760
  %2247 = vmatmul.f32.gmra.mxu0 %v2246
  %v2248 = vpop.f32.mrf.mxu0
  %v2249 = vadd.f32 %v2208, %v2248
  %2250 = vdwg.mxu0
  %v2251 = vand.u32 %v1510, 4294901760
  %v2252 = vsub.f32 %v1510, %v2251
  %v2253 = vand.u32 %v2252, 4294901760
  %v2254 = vsub.f32 %v2252, %v2253
  %v2255 = vand.u32 %v2254, 4294901760
  %2256 = vmatpush.msra.mxu0 %v2255
  %v2257 = vand.u32 %v1509, 4294901760
  %v2258 = vsub.f32 %v1509, %v2257
  %v2259 = vand.u32 %v2258, 4294901760
  %v2260 = vsub.f32 %v2258, %v2259
  %v2261 = vand.u32 %v2260, 4294901760
  %2262 = vmatpush.msra.mxu0 %v2261
  %v2263 = vand.u32 %v1508, 4294901760
  %v2264 = vsub.f32 %v1508, %v2263
  %v2265 = vand.u32 %v2264, 4294901760
  %v2266 = vsub.f32 %v2264, %v2265
  %v2267 = vand.u32 %v2266, 4294901760
  %2268 = vmatpush.msra.mxu0 %v2267
  %v2269 = vand.u32 %v1507, 4294901760
  %v2270 = vsub.f32 %v1507, %v2269
  %v2271 = vand.u32 %v2270, 4294901760
  %v2272 = vsub.f32 %v2270, %v2271
  %v2273 = vand.u32 %v2272, 4294901760
  %2274 = vmatpush.msra.mxu0 %v2273
  %v2275 = vand.u32 %v1506, 4294901760
  %v2276 = vsub.f32 %v1506, %v2275
  %v2277 = vand.u32 %v2276, 4294901760
  %v2278 = vsub.f32 %v2276, %v2277
  %v2279 = vand.u32 %v2278, 4294901760
  %2280 = vmatpush.msra.mxu0 %v2279
  %v2281 = vand.u32 %v1505, 4294901760
  %v2282 = vsub.f32 %v1505, %v2281
  %v2283 = vand.u32 %v2282, 4294901760
  %v2284 = vsub.f32 %v2282, %v2283
  %v2285 = vand.u32 %v2284, 4294901760
  %2286 = vmatpush.msra.mxu0 %v2285
  %v2287 = vand.u32 %v1504, 4294901760
  %v2288 = vsub.f32 %v1504, %v2287
  %v2289 = vand.u32 %v2288, 4294901760
  %v2290 = vsub.f32 %v2288, %v2289
  %v2291 = vand.u32 %v2290, 4294901760
  %2292 = vmatpush.msra.mxu0 %v2291
  %v2293 = vand.u32 %v1503, 4294901760
  %v2294 = vsub.f32 %v1503, %v2293
  %v2295 = vand.u32 %v2294, 4294901760
  %v2296 = vsub.f32 %v2294, %v2295
  %v2297 = vand.u32 %v2296, 4294901760
  %2298 = vmatpush.msra.mxu0 %v2297
  %v2299 = vand.u32 %v1502, 4294901760
  %v2300 = vsub.f32 %v1502, %v2299
  %v2301 = vand.u32 %v2300, 4294901760
  %v2302 = vsub.f32 %v2300, %v2301
  %v2303 = vand.u32 %v2302, 4294901760
  %2304 = vmatpush.msra.mxu0 %v2303
  %v2305 = vand.u32 %v1501, 4294901760
  %v2306 = vsub.f32 %v1501, %v2305
  %v2307 = vand.u32 %v2306, 4294901760
  %v2308 = vsub.f32 %v2306, %v2307
  %v2309 = vand.u32 %v2308, 4294901760
  %2310 = vmatpush.msra.mxu0 %v2309
  %v2311 = vand.u32 %v1500, 4294901760
  %v2312 = vsub.f32 %v1500, %v2311
  %v2313 = vand.u32 %v2312, 4294901760
  %v2314 = vsub.f32 %v2312, %v2313
  %v2315 = vand.u32 %v2314, 4294901760
  %2316 = vmatpush.msra.mxu0 %v2315
  %v2317 = vand.u32 %v1499, 4294901760
  %v2318 = vsub.f32 %v1499, %v2317
  %v2319 = vand.u32 %v2318, 4294901760
  %v2320 = vsub.f32 %v2318, %v2319
  %v2321 = vand.u32 %v2320, 4294901760
  %2322 = vmatpush.msra.mxu0 %v2321
  %v2323 = vand.u32 %v1498, 4294901760
  %v2324 = vsub.f32 %v1498, %v2323
  %v2325 = vand.u32 %v2324, 4294901760
  %v2326 = vsub.f32 %v2324, %v2325
  %v2327 = vand.u32 %v2326, 4294901760
  %2328 = vmatpush.msra.mxu0 %v2327
  %v2329 = vand.u32 %v1497, 4294901760
  %v2330 = vsub.f32 %v1497, %v2329
  %v2331 = vand.u32 %v2330, 4294901760
  %v2332 = vsub.f32 %v2330, %v2331
  %v2333 = vand.u32 %v2332, 4294901760
  %2334 = vmatpush.msra.mxu0 %v2333
  %v2335 = vand.u32 %v1496, 4294901760
  %v2336 = vsub.f32 %v1496, %v2335
  %v2337 = vand.u32 %v2336, 4294901760
  %v2338 = vsub.f32 %v2336, %v2337
  %v2339 = vand.u32 %v2338, 4294901760
  %2340 = vmatpush.msra.mxu0 %v2339
  %v2341 = vand.u32 %v1495, 4294901760
  %v2342 = vsub.f32 %v1495, %v2341
  %v2343 = vand.u32 %v2342, 4294901760
  %v2344 = vsub.f32 %v2342, %v2343
  %v2345 = vand.u32 %v2344, 4294901760
  %2346 = vmatpush.msra.mxu0 %v2345
  %v2347 = vand.u32 %v1461, 4294901760
  %2348 = vmatmul.f32.gmra.mxu0 %v2347
  %v2349 = vpop.f32.mrf.mxu0
  %v2350 = vadd.f32 %v2249, %v2349
  %2351 = vdwg.mxu0
  %v2352 = vand.u32 %v1510, 4294901760
  %v2353 = vsub.f32 %v1510, %v2352
  %2354 = vmatpush.msra.mxu0 %v2353
  %v2355 = vand.u32 %v1509, 4294901760
  %v2356 = vsub.f32 %v1509, %v2355
  %2357 = vmatpush.msra.mxu0 %v2356
  %v2358 = vand.u32 %v1508, 4294901760
  %v2359 = vsub.f32 %v1508, %v2358
  %2360 = vmatpush.msra.mxu0 %v2359
  %v2361 = vand.u32 %v1507, 4294901760
  %v2362 = vsub.f32 %v1507, %v2361
  %2363 = vmatpush.msra.mxu0 %v2362
  %v2364 = vand.u32 %v1506, 4294901760
  %v2365 = vsub.f32 %v1506, %v2364
  %2366 = vmatpush.msra.mxu0 %v2365
  %v2367 = vand.u32 %v1505, 4294901760
  %v2368 = vsub.f32 %v1505, %v2367
  %2369 = vmatpush.msra.mxu0 %v2368
  %v2370 = vand.u32 %v1504, 4294901760
  %v2371 = vsub.f32 %v1504, %v2370
  %2372 = vmatpush.msra.mxu0 %v2371
  %v2373 = vand.u32 %v1503, 4294901760
  %v2374 = vsub.f32 %v1503, %v2373
  %2375 = vmatpush.msra.mxu0 %v2374
  %v2376 = vand.u32 %v1502, 4294901760
  %v2377 = vsub.f32 %v1502, %v2376
  %2378 = vmatpush.msra.mxu0 %v2377
  %v2379 = vand.u32 %v1501, 4294901760
  %v2380 = vsub.f32 %v1501, %v2379
  %2381 = vmatpush.msra.mxu0 %v2380
  %v2382 = vand.u32 %v1500, 4294901760
  %v2383 = vsub.f32 %v1500, %v2382
  %2384 = vmatpush.msra.mxu0 %v2383
  %v2385 = vand.u32 %v1499, 4294901760
  %v2386 = vsub.f32 %v1499, %v2385
  %2387 = vmatpush.msra.mxu0 %v2386
  %v2388 = vand.u32 %v1498, 4294901760
  %v2389 = vsub.f32 %v1498, %v2388
  %2390 = vmatpush.msra.mxu0 %v2389
  %v2391 = vand.u32 %v1497, 4294901760
  %v2392 = vsub.f32 %v1497, %v2391
  %2393 = vmatpush.msra.mxu0 %v2392
  %v2394 = vand.u32 %v1496, 4294901760
  %v2395 = vsub.f32 %v1496, %v2394
  %2396 = vmatpush.msra.mxu0 %v2395
  %v2397 = vand.u32 %v1495, 4294901760
  %v2398 = vsub.f32 %v1495, %v2397
  %2399 = vmatpush.msra.mxu0 %v2398
  %v2400 = vand.u32 %v1461, 4294901760
  %v2401 = vsub.f32 %v1461, %v2400
  %2402 = vmatmul.f32.gmra.mxu0 %v2401
  %v2403 = vpop.f32.mrf.mxu0
  %v2404 = vadd.f32 %v2350, %v2403
  %2405 = vdwg.mxu0
  %v2406 = vand.u32 %v1510, 4294901760
  %2407 = vmatpush.msra.mxu0 %v2406
  %v2408 = vand.u32 %v1509, 4294901760
  %2409 = vmatpush.msra.mxu0 %v2408
  %v2410 = vand.u32 %v1508, 4294901760
  %2411 = vmatpush.msra.mxu0 %v2410
  %v2412 = vand.u32 %v1507, 4294901760
  %2413 = vmatpush.msra.mxu0 %v2412
  %v2414 = vand.u32 %v1506, 4294901760
  %2415 = vmatpush.msra.mxu0 %v2414
  %v2416 = vand.u32 %v1505, 4294901760
  %2417 = vmatpush.msra.mxu0 %v2416
  %v2418 = vand.u32 %v1504, 4294901760
  %2419 = vmatpush.msra.mxu0 %v2418
  %v2420 = vand.u32 %v1503, 4294901760
  %2421 = vmatpush.msra.mxu0 %v2420
  %v2422 = vand.u32 %v1502, 4294901760
  %2423 = vmatpush.msra.mxu0 %v2422
  %v2424 = vand.u32 %v1501, 4294901760
  %2425 = vmatpush.msra.mxu0 %v2424
  %v2426 = vand.u32 %v1500, 4294901760
  %2427 = vmatpush.msra.mxu0 %v2426
  %v2428 = vand.u32 %v1499, 4294901760
  %2429 = vmatpush.msra.mxu0 %v2428
  %v2430 = vand.u32 %v1498, 4294901760
  %2431 = vmatpush.msra.mxu0 %v2430
  %v2432 = vand.u32 %v1497, 4294901760
  %2433 = vmatpush.msra.mxu0 %v2432
  %v2434 = vand.u32 %v1496, 4294901760
  %2435 = vmatpush.msra.mxu0 %v2434
  %v2436 = vand.u32 %v1495, 4294901760
  %2437 = vmatpush.msra.mxu0 %v2436
  %v2438 = vand.u32 %v1461, 4294901760
  %v2439 = vsub.f32 %v1461, %v2438
  %v2440 = vand.u32 %v2439, 4294901760
  %2441 = vmatmul.f32.gmra.mxu0 %v2440
  %v2442 = vpop.f32.mrf.mxu0
  %v2443 = vadd.f32 %v2404, %v2442
  %2444 = vdwg.mxu0
  %v2445 = vand.u32 %v1510, 4294901760
  %v2446 = vsub.f32 %v1510, %v2445
  %v2447 = vand.u32 %v2446, 4294901760
  %2448 = vmatpush.msra.mxu0 %v2447
  %v2449 = vand.u32 %v1509, 4294901760
  %v2450 = vsub.f32 %v1509, %v2449
  %v2451 = vand.u32 %v2450, 4294901760
  %2452 = vmatpush.msra.mxu0 %v2451
  %v2453 = vand.u32 %v1508, 4294901760
  %v2454 = vsub.f32 %v1508, %v2453
  %v2455 = vand.u32 %v2454, 4294901760
  %2456 = vmatpush.msra.mxu0 %v2455
  %v2457 = vand.u32 %v1507, 4294901760
  %v2458 = vsub.f32 %v1507, %v2457
  %v2459 = vand.u32 %v2458, 4294901760
  %2460 = vmatpush.msra.mxu0 %v2459
  %v2461 = vand.u32 %v1506, 4294901760
  %v2462 = vsub.f32 %v1506, %v2461
  %v2463 = vand.u32 %v2462, 4294901760
  %2464 = vmatpush.msra.mxu0 %v2463
  %v2465 = vand.u32 %v1505, 4294901760
  %v2466 = vsub.f32 %v1505, %v2465
  %v2467 = vand.u32 %v2466, 4294901760
  %2468 = vmatpush.msra.mxu0 %v2467
  %v2469 = vand.u32 %v1504, 4294901760
  %v2470 = vsub.f32 %v1504, %v2469
  %v2471 = vand.u32 %v2470, 4294901760
  %2472 = vmatpush.msra.mxu0 %v2471
  %v2473 = vand.u32 %v1503, 4294901760
  %v2474 = vsub.f32 %v1503, %v2473
  %v2475 = vand.u32 %v2474, 4294901760
  %2476 = vmatpush.msra.mxu0 %v2475
  %v2477 = vand.u32 %v1502, 4294901760
  %v2478 = vsub.f32 %v1502, %v2477
  %v2479 = vand.u32 %v2478, 4294901760
  %2480 = vmatpush.msra.mxu0 %v2479
  %v2481 = vand.u32 %v1501, 4294901760
  %v2482 = vsub.f32 %v1501, %v2481
  %v2483 = vand.u32 %v2482, 4294901760
  %2484 = vmatpush.msra.mxu0 %v2483
  %v2485 = vand.u32 %v1500, 4294901760
  %v2486 = vsub.f32 %v1500, %v2485
  %v2487 = vand.u32 %v2486, 4294901760
  %2488 = vmatpush.msra.mxu0 %v2487
  %v2489 = vand.u32 %v1499, 4294901760
  %v2490 = vsub.f32 %v1499, %v2489
  %v2491 = vand.u32 %v2490, 4294901760
  %2492 = vmatpush.msra.mxu0 %v2491
  %v2493 = vand.u32 %v1498, 4294901760
  %v2494 = vsub.f32 %v1498, %v2493
  %v2495 = vand.u32 %v2494, 4294901760
  %2496 = vmatpush.msra.mxu0 %v2495
  %v2497 = vand.u32 %v1497, 4294901760
  %v2498 = vsub.f32 %v1497, %v2497
  %v2499 = vand.u32 %v2498, 4294901760
  %2500 = vmatpush.msra.mxu0 %v2499
  %v2501 = vand.u32 %v1496, 4294901760
  %v2502 = vsub.f32 %v1496, %v2501
  %v2503 = vand.u32 %v2502, 4294901760
  %2504 = vmatpush.msra.mxu0 %v2503
  %v2505 = vand.u32 %v1495, 4294901760
  %v2506 = vsub.f32 %v1495, %v2505
  %v2507 = vand.u32 %v2506, 4294901760
  %2508 = vmatpush.msra.mxu0 %v2507
  %v2509 = vand.u32 %v1461, 4294901760
  %2510 = vmatmul.f32.gmra.mxu0 %v2509
  %v2511 = vpop.f32.mrf.mxu0
  %v2512 = vadd.f32 %v2443, %v2511
  %2513 = vdwg.mxu0
  %v2514 = vand.u32 %v1510, 4294901760
  %2515 = vmatpush.msra.mxu0 %v2514
  %v2516 = vand.u32 %v1509, 4294901760
  %2517 = vmatpush.msra.mxu0 %v2516
  %v2518 = vand.u32 %v1508, 4294901760
  %2519 = vmatpush.msra.mxu0 %v2518
  %v2520 = vand.u32 %v1507, 4294901760
  %2521 = vmatpush.msra.mxu0 %v2520
  %v2522 = vand.u32 %v1506, 4294901760
  %2523 = vmatpush.msra.mxu0 %v2522
  %v2524 = vand.u32 %v1505, 4294901760
  %2525 = vmatpush.msra.mxu0 %v2524
  %v2526 = vand.u32 %v1504, 4294901760
  %2527 = vmatpush.msra.mxu0 %v2526
  %v2528 = vand.u32 %v1503, 4294901760
  %2529 = vmatpush.msra.mxu0 %v2528
  %v2530 = vand.u32 %v1502, 4294901760
  %2531 = vmatpush.msra.mxu0 %v2530
  %v2532 = vand.u32 %v1501, 4294901760
  %2533 = vmatpush.msra.mxu0 %v2532
  %v2534 = vand.u32 %v1500, 4294901760
  %2535 = vmatpush.msra.mxu0 %v2534
  %v2536 = vand.u32 %v1499, 4294901760
  %2537 = vmatpush.msra.mxu0 %v2536
  %v2538 = vand.u32 %v1498, 4294901760
  %2539 = vmatpush.msra.mxu0 %v2538
  %v2540 = vand.u32 %v1497, 4294901760
  %2541 = vmatpush.msra.mxu0 %v2540
  %v2542 = vand.u32 %v1496, 4294901760
  %2543 = vmatpush.msra.mxu0 %v2542
  %v2544 = vand.u32 %v1495, 4294901760
  %2545 = vmatpush.msra.mxu0 %v2544
  %v2546 = vand.u32 %v1461, 4294901760
  %2547 = vmatmul.f32.gmra.mxu0 %v2546
  %v2548 = vpop.f32.mrf.mxu0
  %v2549 = vadd.f32 %v2512, %v2548
  %2550 = vdwg.mxu0
  %v2551 = vand.u32 %v1526, 4294901760
  %2552 = vmatpush.msra.mxu0 %v2551
  %v2553 = vand.u32 %v1525, 4294901760
  %2554 = vmatpush.msra.mxu0 %v2553
  %v2555 = vand.u32 %v1524, 4294901760
  %2556 = vmatpush.msra.mxu0 %v2555
  %v2557 = vand.u32 %v1523, 4294901760
  %2558 = vmatpush.msra.mxu0 %v2557
  %v2559 = vand.u32 %v1522, 4294901760
  %2560 = vmatpush.msra.mxu0 %v2559
  %v2561 = vand.u32 %v1521, 4294901760
  %2562 = vmatpush.msra.mxu0 %v2561
  %v2563 = vand.u32 %v1520, 4294901760
  %2564 = vmatpush.msra.mxu0 %v2563
  %v2565 = vand.u32 %v1519, 4294901760
  %2566 = vmatpush.msra.mxu0 %v2565
  %v2567 = vand.u32 %v1518, 4294901760
  %2568 = vmatpush.msra.mxu0 %v2567
  %v2569 = vand.u32 %v1517, 4294901760
  %2570 = vmatpush.msra.mxu0 %v2569
  %v2571 = vand.u32 %v1516, 4294901760
  %2572 = vmatpush.msra.mxu0 %v2571
  %v2573 = vand.u32 %v1515, 4294901760
  %2574 = vmatpush.msra.mxu0 %v2573
  %v2575 = vand.u32 %v1514, 4294901760
  %2576 = vmatpush.msra.mxu0 %v2575
  %v2577 = vand.u32 %v1513, 4294901760
  %2578 = vmatpush.msra.mxu0 %v2577
  %v2579 = vand.u32 %v1512, 4294901760
  %2580 = vmatpush.msra.mxu0 %v2579
  %v2581 = vand.u32 %v1511, 4294901760
  %2582 = vmatpush.msra.mxu0 %v2581
  %v2583 = vand.u32 %v1462, 4294901760
  %v2584 = vsub.f32 %v1462, %v2583
  %v2585 = vand.u32 %v2584, 4294901760
  %v2586 = vsub.f32 %v2584, %v2585
  %v2587 = vand.u32 %v2586, 4294901760
  %2588 = vmatmul.f32.gmra.mxu0 %v2587
  %v2589 = vpop.f32.mrf.mxu0
  %v2590 = vadd.f32 %v2549, %v2589
  %2591 = vdwg.mxu0
  %v2592 = vand.u32 %v1526, 4294901760
  %v2593 = vsub.f32 %v1526, %v2592
  %v2594 = vand.u32 %v2593, 4294901760
  %v2595 = vsub.f32 %v2593, %v2594
  %v2596 = vand.u32 %v2595, 4294901760
  %2597 = vmatpush.msra.mxu0 %v2596
  %v2598 = vand.u32 %v1525, 4294901760
  %v2599 = vsub.f32 %v1525, %v2598
  %v2600 = vand.u32 %v2599, 4294901760
  %v2601 = vsub.f32 %v2599, %v2600
  %v2602 = vand.u32 %v2601, 4294901760
  %2603 = vmatpush.msra.mxu0 %v2602
  %v2604 = vand.u32 %v1524, 4294901760
  %v2605 = vsub.f32 %v1524, %v2604
  %v2606 = vand.u32 %v2605, 4294901760
  %v2607 = vsub.f32 %v2605, %v2606
  %v2608 = vand.u32 %v2607, 4294901760
  %2609 = vmatpush.msra.mxu0 %v2608
  %v2610 = vand.u32 %v1523, 4294901760
  %v2611 = vsub.f32 %v1523, %v2610
  %v2612 = vand.u32 %v2611, 4294901760
  %v2613 = vsub.f32 %v2611, %v2612
  %v2614 = vand.u32 %v2613, 4294901760
  %2615 = vmatpush.msra.mxu0 %v2614
  %v2616 = vand.u32 %v1522, 4294901760
  %v2617 = vsub.f32 %v1522, %v2616
  %v2618 = vand.u32 %v2617, 4294901760
  %v2619 = vsub.f32 %v2617, %v2618
  %v2620 = vand.u32 %v2619, 4294901760
  %2621 = vmatpush.msra.mxu0 %v2620
  %v2622 = vand.u32 %v1521, 4294901760
  %v2623 = vsub.f32 %v1521, %v2622
  %v2624 = vand.u32 %v2623, 4294901760
  %v2625 = vsub.f32 %v2623, %v2624
  %v2626 = vand.u32 %v2625, 4294901760
  %2627 = vmatpush.msra.mxu0 %v2626
  %v2628 = vand.u32 %v1520, 4294901760
  %v2629 = vsub.f32 %v1520, %v2628
  %v2630 = vand.u32 %v2629, 4294901760
  %v2631 = vsub.f32 %v2629, %v2630
  %v2632 = vand.u32 %v2631, 4294901760
  %2633 = vmatpush.msra.mxu0 %v2632
  %v2634 = vand.u32 %v1519, 4294901760
  %v2635 = vsub.f32 %v1519, %v2634
  %v2636 = vand.u32 %v2635, 4294901760
  %v2637 = vsub.f32 %v2635, %v2636
  %v2638 = vand.u32 %v2637, 4294901760
  %2639 = vmatpush.msra.mxu0 %v2638
  %v2640 = vand.u32 %v1518, 4294901760
  %v2641 = vsub.f32 %v1518, %v2640
  %v2642 = vand.u32 %v2641, 4294901760
  %v2643 = vsub.f32 %v2641, %v2642
  %v2644 = vand.u32 %v2643, 4294901760
  %2645 = vmatpush.msra.mxu0 %v2644
  %v2646 = vand.u32 %v1517, 4294901760
  %v2647 = vsub.f32 %v1517, %v2646
  %v2648 = vand.u32 %v2647, 4294901760
  %v2649 = vsub.f32 %v2647, %v2648
  %v2650 = vand.u32 %v2649, 4294901760
  %2651 = vmatpush.msra.mxu0 %v2650
  %v2652 = vand.u32 %v1516, 4294901760
  %v2653 = vsub.f32 %v1516, %v2652
  %v2654 = vand.u32 %v2653, 4294901760
  %v2655 = vsub.f32 %v2653, %v2654
  %v2656 = vand.u32 %v2655, 4294901760
  %2657 = vmatpush.msra.mxu0 %v2656
  %v2658 = vand.u32 %v1515, 4294901760
  %v2659 = vsub.f32 %v1515, %v2658
  %v2660 = vand.u32 %v2659, 4294901760
  %v2661 = vsub.f32 %v2659, %v2660
  %v2662 = vand.u32 %v2661, 4294901760
  %2663 = vmatpush.msra.mxu0 %v2662
  %v2664 = vand.u32 %v1514, 4294901760
  %v2665 = vsub.f32 %v1514, %v2664
  %v2666 = vand.u32 %v2665, 4294901760
  %v2667 = vsub.f32 %v2665, %v2666
  %v2668 = vand.u32 %v2667, 4294901760
  %2669 = vmatpush.msra.mxu0 %v2668
  %v2670 = vand.u32 %v1513, 4294901760
  %v2671 = vsub.f32 %v1513, %v2670
  %v2672 = vand.u32 %v2671, 4294901760
  %v2673 = vsub.f32 %v2671, %v2672
  %v2674 = vand.u32 %v2673, 4294901760
  %2675 = vmatpush.msra.mxu0 %v2674
  %v2676 = vand.u32 %v1512, 4294901760
  %v2677 = vsub.f32 %v1512, %v2676
  %v2678 = vand.u32 %v2677, 4294901760
  %v2679 = vsub.f32 %v2677, %v2678
  %v2680 = vand.u32 %v2679, 4294901760
  %2681 = vmatpush.msra.mxu0 %v2680
  %v2682 = vand.u32 %v1511, 4294901760
  %v2683 = vsub.f32 %v1511, %v2682
  %v2684 = vand.u32 %v2683, 4294901760
  %v2685 = vsub.f32 %v2683, %v2684
  %v2686 = vand.u32 %v2685, 4294901760
  %2687 = vmatpush.msra.mxu0 %v2686
  %v2688 = vand.u32 %v1462, 4294901760
  %2689 = vmatmul.f32.gmra.mxu0 %v2688
  %v2690 = vpop.f32.mrf.mxu0
  %v2691 = vadd.f32 %v2590, %v2690
  %2692 = vdwg.mxu0
  %v2693 = vand.u32 %v1526, 4294901760
  %v2694 = vsub.f32 %v1526, %v2693
  %2695 = vmatpush.msra.mxu0 %v2694
  %v2696 = vand.u32 %v1525, 4294901760
  %v2697 = vsub.f32 %v1525, %v2696
  %2698 = vmatpush.msra.mxu0 %v2697
  %v2699 = vand.u32 %v1524, 4294901760
  %v2700 = vsub.f32 %v1524, %v2699
  %2701 = vmatpush.msra.mxu0 %v2700
  %v2702 = vand.u32 %v1523, 4294901760
  %v2703 = vsub.f32 %v1523, %v2702
  %2704 = vmatpush.msra.mxu0 %v2703
  %v2705 = vand.u32 %v1522, 4294901760
  %v2706 = vsub.f32 %v1522, %v2705
  %2707 = vmatpush.msra.mxu0 %v2706
  %v2708 = vand.u32 %v1521, 4294901760
  %v2709 = vsub.f32 %v1521, %v2708
  %2710 = vmatpush.msra.mxu0 %v2709
  %v2711 = vand.u32 %v1520, 4294901760
  %v2712 = vsub.f32 %v1520, %v2711
  %2713 = vmatpush.msra.mxu0 %v2712
  %v2714 = vand.u32 %v1519, 4294901760
  %v2715 = vsub.f32 %v1519, %v2714
  %2716 = vmatpush.msra.mxu0 %v2715
  %v2717 = vand.u32 %v1518, 4294901760
  %v2718 = vsub.f32 %v1518, %v2717
  %2719 = vmatpush.msra.mxu0 %v2718
  %v2720 = vand.u32 %v1517, 4294901760
  %v2721 = vsub.f32 %v1517, %v2720
  %2722 = vmatpush.msra.mxu0 %v2721
  %v2723 = vand.u32 %v1516, 4294901760
  %v2724 = vsub.f32 %v1516, %v2723
  %2725 = vmatpush.msra.mxu0 %v2724
  %v2726 = vand.u32 %v1515, 4294901760
  %v2727 = vsub.f32 %v1515, %v2726
  %2728 = vmatpush.msra.mxu0 %v2727
  %v2729 = vand.u32 %v1514, 4294901760
  %v2730 = vsub.f32 %v1514, %v2729
  %2731 = vmatpush.msra.mxu0 %v2730
  %v2732 = vand.u32 %v1513, 4294901760
  %v2733 = vsub.f32 %v1513, %v2732
  %2734 = vmatpush.msra.mxu0 %v2733
  %v2735 = vand.u32 %v1512, 4294901760
  %v2736 = vsub.f32 %v1512, %v2735
  %2737 = vmatpush.msra.mxu0 %v2736
  %v2738 = vand.u32 %v1511, 4294901760
  %v2739 = vsub.f32 %v1511, %v2738
  %2740 = vmatpush.msra.mxu0 %v2739
  %v2741 = vand.u32 %v1462, 4294901760
  %v2742 = vsub.f32 %v1462, %v2741
  %2743 = vmatmul.f32.gmra.mxu0 %v2742
  %v2744 = vpop.f32.mrf.mxu0
  %v2745 = vadd.f32 %v2691, %v2744
  %2746 = vdwg.mxu0
  %v2747 = vand.u32 %v1526, 4294901760
  %2748 = vmatpush.msra.mxu0 %v2747
  %v2749 = vand.u32 %v1525, 4294901760
  %2750 = vmatpush.msra.mxu0 %v2749
  %v2751 = vand.u32 %v1524, 4294901760
  %2752 = vmatpush.msra.mxu0 %v2751
  %v2753 = vand.u32 %v1523, 4294901760
  %2754 = vmatpush.msra.mxu0 %v2753
  %v2755 = vand.u32 %v1522, 4294901760
  %2756 = vmatpush.msra.mxu0 %v2755
  %v2757 = vand.u32 %v1521, 4294901760
  %2758 = vmatpush.msra.mxu0 %v2757
  %v2759 = vand.u32 %v1520, 4294901760
  %2760 = vmatpush.msra.mxu0 %v2759
  %v2761 = vand.u32 %v1519, 4294901760
  %2762 = vmatpush.msra.mxu0 %v2761
  %v2763 = vand.u32 %v1518, 4294901760
  %2764 = vmatpush.msra.mxu0 %v2763
  %v2765 = vand.u32 %v1517, 4294901760
  %2766 = vmatpush.msra.mxu0 %v2765
  %v2767 = vand.u32 %v1516, 4294901760
  %2768 = vmatpush.msra.mxu0 %v2767
  %v2769 = vand.u32 %v1515, 4294901760
  %2770 = vmatpush.msra.mxu0 %v2769
  %v2771 = vand.u32 %v1514, 4294901760
  %2772 = vmatpush.msra.mxu0 %v2771
  %v2773 = vand.u32 %v1513, 4294901760
  %2774 = vmatpush.msra.mxu0 %v2773
  %v2775 = vand.u32 %v1512, 4294901760
  %2776 = vmatpush.msra.mxu0 %v2775
  %v2777 = vand.u32 %v1511, 4294901760
  %2778 = vmatpush.msra.mxu0 %v2777
  %v2779 = vand.u32 %v1462, 4294901760
  %v2780 = vsub.f32 %v1462, %v2779
  %v2781 = vand.u32 %v2780, 4294901760
  %2782 = vmatmul.f32.gmra.mxu0 %v2781
  %v2783 = vpop.f32.mrf.mxu0
  %v2784 = vadd.f32 %v2745, %v2783
  %2785 = vdwg.mxu0
  %v2786 = vand.u32 %v1526, 4294901760
  %v2787 = vsub.f32 %v1526, %v2786
  %v2788 = vand.u32 %v2787, 4294901760
  %2789 = vmatpush.msra.mxu0 %v2788
  %v2790 = vand.u32 %v1525, 4294901760
  %v2791 = vsub.f32 %v1525, %v2790
  %v2792 = vand.u32 %v2791, 4294901760
  %2793 = vmatpush.msra.mxu0 %v2792
  %v2794 = vand.u32 %v1524, 4294901760
  %v2795 = vsub.f32 %v1524, %v2794
  %v2796 = vand.u32 %v2795, 4294901760
  %2797 = vmatpush.msra.mxu0 %v2796
  %v2798 = vand.u32 %v1523, 4294901760
  %v2799 = vsub.f32 %v1523, %v2798
  %v2800 = vand.u32 %v2799, 4294901760
  %2801 = vmatpush.msra.mxu0 %v2800
  %v2802 = vand.u32 %v1522, 4294901760
  %v2803 = vsub.f32 %v1522, %v2802
  %v2804 = vand.u32 %v2803, 4294901760
  %2805 = vmatpush.msra.mxu0 %v2804
  %v2806 = vand.u32 %v1521, 4294901760
  %v2807 = vsub.f32 %v1521, %v2806
  %v2808 = vand.u32 %v2807, 4294901760
  %2809 = vmatpush.msra.mxu0 %v2808
  %v2810 = vand.u32 %v1520, 4294901760
  %v2811 = vsub.f32 %v1520, %v2810
  %v2812 = vand.u32 %v2811, 4294901760
  %2813 = vmatpush.msra.mxu0 %v2812
  %v2814 = vand.u32 %v1519, 4294901760
  %v2815 = vsub.f32 %v1519, %v2814
  %v2816 = vand.u32 %v2815, 4294901760
  %2817 = vmatpush.msra.mxu0 %v2816
  %v2818 = vand.u32 %v1518, 4294901760
  %v2819 = vsub.f32 %v1518, %v2818
  %v2820 = vand.u32 %v2819, 4294901760
  %2821 = vmatpush.msra.mxu0 %v2820
  %v2822 = vand.u32 %v1517, 4294901760
  %v2823 = vsub.f32 %v1517, %v2822
  %v2824 = vand.u32 %v2823, 4294901760
  %2825 = vmatpush.msra.mxu0 %v2824
  %v2826 = vand.u32 %v1516, 4294901760
  %v2827 = vsub.f32 %v1516, %v2826
  %v2828 = vand.u32 %v2827, 4294901760
  %2829 = vmatpush.msra.mxu0 %v2828
  %v2830 = vand.u32 %v1515, 4294901760
  %v2831 = vsub.f32 %v1515, %v2830
  %v2832 = vand.u32 %v2831, 4294901760
  %2833 = vmatpush.msra.mxu0 %v2832
  %v2834 = vand.u32 %v1514, 4294901760
  %v2835 = vsub.f32 %v1514, %v2834
  %v2836 = vand.u32 %v2835, 4294901760
  %2837 = vmatpush.msra.mxu0 %v2836
  %v2838 = vand.u32 %v1513, 4294901760
  %v2839 = vsub.f32 %v1513, %v2838
  %v2840 = vand.u32 %v2839, 4294901760
  %2841 = vmatpush.msra.mxu0 %v2840
  %v2842 = vand.u32 %v1512, 4294901760
  %v2843 = vsub.f32 %v1512, %v2842
  %v2844 = vand.u32 %v2843, 4294901760
  %2845 = vmatpush.msra.mxu0 %v2844
  %v2846 = vand.u32 %v1511, 4294901760
  %v2847 = vsub.f32 %v1511, %v2846
  %v2848 = vand.u32 %v2847, 4294901760
  %2849 = vmatpush.msra.mxu0 %v2848
  %v2850 = vand.u32 %v1462, 4294901760
  %2851 = vmatmul.f32.gmra.mxu0 %v2850
  %v2852 = vpop.f32.mrf.mxu0
  %v2853 = vadd.f32 %v2784, %v2852
  %2854 = vdwg.mxu0
  %v2855 = vand.u32 %v1526, 4294901760
  %2856 = vmatpush.msra.mxu0 %v2855
  %v2857 = vand.u32 %v1525, 4294901760
  %2858 = vmatpush.msra.mxu0 %v2857
  %v2859 = vand.u32 %v1524, 4294901760
  %2860 = vmatpush.msra.mxu0 %v2859
  %v2861 = vand.u32 %v1523, 4294901760
  %2862 = vmatpush.msra.mxu0 %v2861
  %v2863 = vand.u32 %v1522, 4294901760
  %2864 = vmatpush.msra.mxu0 %v2863
  %v2865 = vand.u32 %v1521, 4294901760
  %2866 = vmatpush.msra.mxu0 %v2865
  %v2867 = vand.u32 %v1520, 4294901760
  %2868 = vmatpush.msra.mxu0 %v2867
  %v2869 = vand.u32 %v1519, 4294901760
  %2870 = vmatpush.msra.mxu0 %v2869
  %v2871 = vand.u32 %v1518, 4294901760
  %2872 = vmatpush.msra.mxu0 %v2871
  %v2873 = vand.u32 %v1517, 4294901760
  %2874 = vmatpush.msra.mxu0 %v2873
  %v2875 = vand.u32 %v1516, 4294901760
  %2876 = vmatpush.msra.mxu0 %v2875
  %v2877 = vand.u32 %v1515, 4294901760
  %2878 = vmatpush.msra.mxu0 %v2877
  %v2879 = vand.u32 %v1514, 4294901760
  %2880 = vmatpush.msra.mxu0 %v2879
  %v2881 = vand.u32 %v1513, 4294901760
  %2882 = vmatpush.msra.mxu0 %v2881
  %v2883 = vand.u32 %v1512, 4294901760
  %2884 = vmatpush.msra.mxu0 %v2883
  %v2885 = vand.u32 %v1511, 4294901760
  %2886 = vmatpush.msra.mxu0 %v2885
  %v2887 = vand.u32 %v1462, 4294901760
  %2888 = vmatmul.f32.gmra.mxu0 %v2887
  %v2889 = vpop.f32.mrf.mxu0
  %v2890 = vadd.f32 %v2853, %v2889
  %2891 = vdwg.mxu0
  %vm2892 = vcmask 778240
  %2893 = vst.msk [vmem:[%s5] sm:$0x1] %vm2892, %v2890
  // Predicated region
  $region22: #{iris_net_forward.1} parent=0 // pred_check
    _
  $region23: #{iris_net_forward.1} parent=0 // pred_check_branch
    %2895 = sbr.rel (0) target = $region25
  $region24: #{iris_net_forward.1} parent=0 // pred_region
    _
  $region25: #{iris_net_forward.1} parent=0 // pred_fallthru
    _
  // Predicated region
  $region26: #{iris_net_forward.1} parent=0 // pred_check
    _
  $region27: #{iris_net_forward.1} parent=0 // pred_check_branch
    %2897 = sbr.rel (0) target = $region29
  $region28: #{iris_net_forward.1} parent=0 // pred_region
    _
  $region29: #{iris_net_forward.1} parent=0 // pred_fallthru
    _

</llo_original>
